<compile_context>
chip_gen: v7x
topology: tpu7x:2x2x1
jax: 0.10.0
libtpu: 0.0.40
codegen_flags: <defaults>
</compile_context>

<pallas_src>
import numpy as np

import jax
import jax.numpy as jnp
from jax.experimental import pallas as pl
from jax.experimental.pallas import tpu as pltpu


# ---------------------------------------------------------------------------
# Model geometry (fixed by the module definition)
# ---------------------------------------------------------------------------
C_IN = 3                      # "inputs" arg of the module
C_OUT = 4                     # Conv1d out channels
K = 8                         # Conv1d kernel size
POOL = 8                      # MaxPool1d kernel/stride
L_POOL = 17                   # pooled length  -> 4 * 17 = 68 flatten features
L_CONV = L_POOL * POOL        # 136
L_IN = L_CONV + K - 1         # 143
FEAT = C_OUT * L_POOL         # 68
HIDDEN = 32
OUTPUTS = 10                  # "outputs" arg of the module
BATCH = 2
BATCH_TILE = 1024             # batch rows per grid step for large batches

X_COLS = C_IN * L_IN          # 429  (lane-dense flattened input row)
PHASE_PAD = 128               # each pooling phase padded to a full lane tile
CONV_COLS = POOL * PHASE_PAD  # 1024 Toeplitz output columns


def _softplus(x):
    # numerically stable softplus: log(1 + exp(x))
    return jnp.maximum(x, 0.0) + jnp.log1p(jnp.exp(-jnp.abs(x)))


# ---------------------------------------------------------------------------
# Static scatter pattern for the banded Toeplitz conv matrix.
# Column  p*128 + (o*17 + i)  holds the taps producing conv output position
# l = 8*i + p of channel o, i.e.  T[c*143 + l + k, col] = w[o, c, k].
# Columns with (col % 128) >= 68 stay all-zero (padding lanes).
# ---------------------------------------------------------------------------
def _build_static_indices():
    rows, cols, o_idx, c_idx, k_idx = [], [], [], [], []
    for o in range(C_OUT):
        for i in range(L_POOL):
            for p in range(POOL):
                col = p * PHASE_PAD + o * L_POOL + i
                l = POOL * i + p
                for c in range(C_IN):
                    for k in range(K):
                        rows.append(c * L_IN + l + k)
                        cols.append(col)
                        o_idx.append(o)
                        c_idx.append(c)
                        k_idx.append(k)
    as_np = lambda a: np.asarray(a, dtype=np.int32)
    return as_np(rows), as_np(cols), as_np(o_idx), as_np(c_idx), as_np(k_idx)


_T_ROWS, _T_COLS, _W_O, _W_C, _W_K = _build_static_indices()
_CB_COLS = np.arange(FEAT, dtype=np.int32)             # 0..67
_CB_CH = (np.arange(FEAT, dtype=np.int32) // L_POOL)   # channel of each feature


# ---------------------------------------------------------------------------
# Fused kernel: Conv1d(MXU) -> MaxPool1d -> Softplus -> Linear -> Softplus -> Linear
# ---------------------------------------------------------------------------
def fused_kernel(x_ref, t_ref, cb_ref, w1_ref, b1_ref, w2_ref, b2_ref, o_ref):
    # x_ref : (nb, 429)        lane-dense flattened input rows
    # t_ref : (429, 1024)      banded Toeplitz conv matrix (resident)
    # cb_ref: (1, 128)         conv bias per pooled feature (padded lanes = 0)
    # w1_ref: (128, 32)        fc1 weight, rows 68..127 are zero
    # b1_ref: (1, 32)  w2_ref: (32, OUTPUTS)  b2_ref: (1, OUTPUTS)
    # o_ref : (nb, OUTPUTS)

    # ---- Conv1d as one MXU matmul; output columns = 8 phases x 128 lanes.
    conv = jnp.dot(x_ref[...], t_ref[...], preferred_element_type=jnp.float32)

    # ---- MaxPool1d(8) BEFORE Softplus (monotonic => identical result):
    # max over the 8 lane-aligned 128-wide phase blocks (free views, no relayout).
    pooled = conv[:, 0:PHASE_PAD]
    for p in range(1, POOL):
        pooled = jnp.maximum(pooled, conv[:, p * PHASE_PAD:(p + 1) * PHASE_PAD])

    # conv bias added after the max (constant per window => same result).
    feat = _softplus(pooled + cb_ref[...])          # (nb, 128); lanes 68.. are
                                                    # harmless (zero fc1 rows)

    # ---- classifier: Linear(68, 32) -> Softplus -> Linear(32, OUTPUTS)
    h = _softplus(jnp.dot(feat, w1_ref[...],
                          preferred_element_type=jnp.float32) + b1_ref[...])
    out = jnp.dot(h, w2_ref[...],
                  preferred_element_type=jnp.float32) + b2_ref[...]
    o_ref[...] = out.astype(o_ref.dtype)


# ---------------------------------------------------------------------------
# Batch tile chooser: big lane-dense tiles, but keep grid length >= 2 when the
# batch allows it (v7x has 2 TensorCores; v5e/v6e are unaffected).
# ---------------------------------------------------------------------------
def _choose_batch_tile(n):
    if n > BATCH_TILE:
        return BATCH_TILE
    if n >= 16:
        half = ((n + 1) // 2 + 7) // 8 * 8   # ~half the batch, 8-row aligned
        if half < n:
            return half
    return n


# ---------------------------------------------------------------------------
# Wrapper: single pallas_call, grid over batch tiles
# ---------------------------------------------------------------------------
def nodropout1d_forward(x, params):
    conv_w, conv_b, fc1_w, fc1_b, fc2_w, fc2_b = params
    n = x.shape[0]
    x2d = x.reshape(n, X_COLS)                       # free, contiguous reshape

    # Banded Toeplitz conv matrix (static scatter pattern, tiny XLA op outside
    # the kernel; passed as a grid-resident VMEM input).
    toep = jnp.zeros((X_COLS, CONV_COLS), jnp.float32)
    toep = toep.at[_T_ROWS, _T_COLS].set(conv_w[_W_O, _W_C, _W_K])

    # Conv bias replicated over the 17 pooled positions of each channel,
    # padded to 128 lanes.
    cb128 = jnp.zeros((1, PHASE_PAD), jnp.float32)
    cb128 = cb128.at[0, _CB_COLS].set(conv_b[_CB_CH])

    # fc1 weight padded from 68 -> 128 input rows (extra rows are zero).
    w1p = jnp.zeros((PHASE_PAD, HIDDEN), jnp.float32).at[:FEAT, :].set(fc1_w.T)

    nb = _choose_batch_tile(n)
    return pl.pallas_call(
        fused_kernel,
        out_shape=jax.ShapeDtypeStruct((n, OUTPUTS), jnp.float32),
        grid=(pl.cdiv(n, nb),),
        in_specs=[
            pl.BlockSpec((nb, X_COLS), lambda i: (i, 0)),            # x slab
            pl.BlockSpec((X_COLS, CONV_COLS), lambda i: (0, 0)),     # Toeplitz
            pl.BlockSpec((1, PHASE_PAD), lambda i: (0, 0)),          # conv bias
            pl.BlockSpec((PHASE_PAD, HIDDEN), lambda i: (0, 0)),     # fc1 w
            pl.BlockSpec((1, HIDDEN), lambda i: (0, 0)),             # fc1 b
            pl.BlockSpec((HIDDEN, OUTPUTS), lambda i: (0, 0)),       # fc2 w
            pl.BlockSpec((1, OUTPUTS), lambda i: (0, 0)),            # fc2 b
        ],
        out_specs=pl.BlockSpec((nb, OUTPUTS), lambda i: (i, 0)),
        compiler_params=pltpu.CompilerParams(
            dimension_semantics=("parallel",),
            vmem_limit_bytes=32 * 1024 * 1024),
    )(x2d, toep, cb128, w1p,
      fc1_b.reshape(1, HIDDEN), fc2_w.T, fc2_b.reshape(1, OUTPUTS))


# ---------------------------------------------------------------------------
# Parameter init (deterministic, PyTorch-style uniform(-1/sqrt(fan_in), ...))
# ---------------------------------------------------------------------------
def init_params(key):
    ks = jax.random.split(key, 6)
    b_conv = 1.0 / jnp.sqrt(C_IN * K)
    b_fc1 = 1.0 / jnp.sqrt(FEAT)
    b_fc2 = 1.0 / jnp.sqrt(HIDDEN)
    conv_w = jax.random.uniform(ks[0], (C_OUT, C_IN, K), jnp.float32,
                                -b_conv, b_conv)
    conv_b = jax.random.uniform(ks[1], (C_OUT,), jnp.float32, -b_conv, b_conv)
    fc1_w = jax.random.uniform(ks[2], (HIDDEN, FEAT), jnp.float32,
                               -b_fc1, b_fc1)
    fc1_b = jax.random.uniform(ks[3], (HIDDEN,), jnp.float32, -b_fc1, b_fc1)
    fc2_w = jax.random.uniform(ks[4], (OUTPUTS, HIDDEN), jnp.float32,
                               -b_fc2, b_fc2)
    fc2_b = jax.random.uniform(ks[5], (OUTPUTS,), jnp.float32, -b_fc2, b_fc2)
    return conv_w, conv_b, fc1_w, fc1_b, fc2_w, fc2_b


# ---------------------------------------------------------------------------
# Pure-JAX reference (full f32 precision) for a numerical sanity check
# ---------------------------------------------------------------------------
def _reference_forward(x, params):
    conv_w, conv_b, fc1_w, fc1_b, fc2_w, fc2_b = params
    hp = jax.lax.Precision.HIGHEST
    n = x.shape[0]
    conv = jnp.zeros((n, C_OUT, L_CONV), jnp.float32) + conv_b[None, :, None]
    for k in range(K):
        conv = conv + jnp.einsum('ncl,oc->nol',
                                 x[:, :, k:k + L_CONV], conv_w[:, :, k],
                                 precision=hp)
    act = _softplus(conv)
    pooled = jnp.max(act.reshape(n, C_OUT, L_POOL, POOL), axis=-1)
    feat = pooled.reshape(n, FEAT)
    h = _softplus(jnp.dot(feat, fc1_w.T, precision=hp) + fc1_b)
    return jnp.dot(h, fc2_w.T, precision=hp) + fc2_b


if __name__ == "__main__":
    key = jax.random.PRNGKey(0)
    k_x, k_p = jax.random.split(key)
    x = jax.random.normal(k_x, (BATCH, C_IN, L_IN), jnp.float32)
    params = init_params(k_p)

    out = jax.block_until_ready(jax.jit(nodropout1d_forward)(x, params))
    assert out.shape == (BATCH, OUTPUTS), out.shape

    ref = _reference_forward(x, params)
    err = float(jnp.max(jnp.abs(out - ref)))
    # Tolerance accounts for the deliberate bf16-operand MXU precision.
    assert err < 5e-2, f"max |kernel - reference| = {err}"
    print("KERNEL_OK")
</pallas_src>

<mosaic_0001>
module attributes {stable_mosaic.version = 11 : i64} {
  func.func @fused_kernel(%arg0: i32, %arg1: memref<2x429xf32, #tpu.memory_space<vmem>>, %arg2: memref<429x1024xf32, #tpu.memory_space<vmem>>, %arg3: memref<1x128xf32, #tpu.memory_space<vmem>>, %arg4: memref<128x32xf32, #tpu.memory_space<vmem>>, %arg5: memref<1x32xf32, #tpu.memory_space<vmem>>, %arg6: memref<32x10xf32, #tpu.memory_space<vmem>>, %arg7: memref<1x10xf32, #tpu.memory_space<vmem>>, %arg8: memref<2x10xf32, #tpu.memory_space<vmem>>) attributes {dimension_semantics = [#tpu.dimension_semantics<parallel>], iteration_bounds = array<i64: 1>, scalar_prefetch = 0 : i64, scratch_operands = 0 : i64, tpu.core_type = #tpu.core_type<tc>, window_params = [{transform_indices = @transform_0, window_bounds = array<i64: 2, 429>}, {pipeline_mode = #tpu.pipeline_mode<synchronous>, transform_indices = @transform_1, window_bounds = array<i64: 429, 1024>}, {pipeline_mode = #tpu.pipeline_mode<synchronous>, transform_indices = @transform_2, window_bounds = array<i64: 1, 128>}, {pipeline_mode = #tpu.pipeline_mode<synchronous>, transform_indices = @transform_3, window_bounds = array<i64: 128, 32>}, {pipeline_mode = #tpu.pipeline_mode<synchronous>, transform_indices = @transform_4, window_bounds = array<i64: 1, 32>}, {pipeline_mode = #tpu.pipeline_mode<synchronous>, transform_indices = @transform_5, window_bounds = array<i64: 32, 10>}, {pipeline_mode = #tpu.pipeline_mode<synchronous>, transform_indices = @transform_6, window_bounds = array<i64: 1, 10>}, {transform_indices = @transform_7, window_bounds = array<i64: 2, 10>}]} {
    %c0 = arith.constant 0 : index
    %c0_0 = arith.constant 0 : index
    %0 = vector.load %arg1[%c0, %c0_0] : memref<2x429xf32, #tpu.memory_space<vmem>>, vector<2x429xf32>
    %c0_1 = arith.constant 0 : index
    %c0_2 = arith.constant 0 : index
    %1 = vector.load %arg2[%c0_1, %c0_2] : memref<429x1024xf32, #tpu.memory_space<vmem>>, vector<429x1024xf32>
    %cst = arith.constant dense<0.000000e+00> : vector<2x1024xf32>
    %2 = tpu.matmul %0, %1, %cst {dimension_numbers = #tpu.dot_dimension_numbers<[1], [0], [0], [1], [0, 0, 1, 1], [], []>} : vector<2x429xf32>, vector<429x1024xf32>, vector<2x1024xf32> -> vector<2x1024xf32>
    %3 = vector.extract_strided_slice %2 {offsets = [0, 0], sizes = [2, 128], strides = [1, 1]} : vector<2x1024xf32> to vector<2x128xf32>
    %4 = vector.extract_strided_slice %2 {offsets = [0, 128], sizes = [2, 128], strides = [1, 1]} : vector<2x1024xf32> to vector<2x128xf32>
    %5 = arith.maximumf %3, %4 : vector<2x128xf32>
    %6 = vector.extract_strided_slice %2 {offsets = [0, 256], sizes = [2, 128], strides = [1, 1]} : vector<2x1024xf32> to vector<2x128xf32>
    %7 = arith.maximumf %5, %6 : vector<2x128xf32>
    %8 = vector.extract_strided_slice %2 {offsets = [0, 384], sizes = [2, 128], strides = [1, 1]} : vector<2x1024xf32> to vector<2x128xf32>
    %9 = arith.maximumf %7, %8 : vector<2x128xf32>
    %10 = vector.extract_strided_slice %2 {offsets = [0, 512], sizes = [2, 128], strides = [1, 1]} : vector<2x1024xf32> to vector<2x128xf32>
    %11 = arith.maximumf %9, %10 : vector<2x128xf32>
    %12 = vector.extract_strided_slice %2 {offsets = [0, 640], sizes = [2, 128], strides = [1, 1]} : vector<2x1024xf32> to vector<2x128xf32>
    %13 = arith.maximumf %11, %12 : vector<2x128xf32>
    %14 = vector.extract_strided_slice %2 {offsets = [0, 768], sizes = [2, 128], strides = [1, 1]} : vector<2x1024xf32> to vector<2x128xf32>
    %15 = arith.maximumf %13, %14 : vector<2x128xf32>
    %16 = vector.extract_strided_slice %2 {offsets = [0, 896], sizes = [2, 128], strides = [1, 1]} : vector<2x1024xf32> to vector<2x128xf32>
    %17 = arith.maximumf %15, %16 : vector<2x128xf32>
    %c0_3 = arith.constant 0 : index
    %c0_4 = arith.constant 0 : index
    %18 = vector.load %arg3[%c0_3, %c0_4] : memref<1x128xf32, #tpu.memory_space<vmem>>, vector<1x128xf32>
    %19 = vector.broadcast %18 : vector<1x128xf32> to vector<2x128xf32>
    %20 = arith.addf %17, %19 : vector<2x128xf32>
    %cst_5 = arith.constant 0.000000e+00 : f32
    %21 = vector.broadcast %cst_5 : f32 to vector<2x128xf32>
    %22 = arith.maximumf %20, %21 : vector<2x128xf32>
    %23 = math.absf %20 : vector<2x128xf32>
    %cst_6 = arith.constant 0.000000e+00 : f32
    %24 = vector.broadcast %cst_6 : f32 to vector<2x128xf32>
    %25 = arith.subf %24, %23 : vector<2x128xf32>
    %26 = math.exp %25 : vector<2x128xf32>
    %27 = math.log1p %26 : vector<2x128xf32>
    %28 = arith.addf %22, %27 : vector<2x128xf32>
    %c0_7 = arith.constant 0 : index
    %c0_8 = arith.constant 0 : index
    %29 = vector.load %arg4[%c0_7, %c0_8] : memref<128x32xf32, #tpu.memory_space<vmem>>, vector<128x32xf32>
    %cst_9 = arith.constant dense<0.000000e+00> : vector<2x32xf32>
    %30 = tpu.matmul %28, %29, %cst_9 {dimension_numbers = #tpu.dot_dimension_numbers<[1], [0], [0], [1], [0, 0, 1, 1], [], []>} : vector<2x128xf32>, vector<128x32xf32>, vector<2x32xf32> -> vector<2x32xf32>
    %c0_10 = arith.constant 0 : index
    %c0_11 = arith.constant 0 : index
    %31 = vector.load %arg5[%c0_10, %c0_11] : memref<1x32xf32, #tpu.memory_space<vmem>>, vector<1x32xf32>
    %32 = vector.broadcast %31 : vector<1x32xf32> to vector<2x32xf32>
    %33 = arith.addf %30, %32 : vector<2x32xf32>
    %cst_12 = arith.constant 0.000000e+00 : f32
    %34 = vector.broadcast %cst_12 : f32 to vector<2x32xf32>
    %35 = arith.maximumf %33, %34 : vector<2x32xf32>
    %36 = math.absf %33 : vector<2x32xf32>
    %cst_13 = arith.constant 0.000000e+00 : f32
    %37 = vector.broadcast %cst_13 : f32 to vector<2x32xf32>
    %38 = arith.subf %37, %36 : vector<2x32xf32>
    %39 = math.exp %38 : vector<2x32xf32>
    %40 = math.log1p %39 : vector<2x32xf32>
    %41 = arith.addf %35, %40 : vector<2x32xf32>
    %c0_14 = arith.constant 0 : index
    %c0_15 = arith.constant 0 : index
    %42 = vector.load %arg6[%c0_14, %c0_15] : memref<32x10xf32, #tpu.memory_space<vmem>>, vector<32x10xf32>
    %cst_16 = arith.constant dense<0.000000e+00> : vector<2x10xf32>
    %43 = tpu.matmul %41, %42, %cst_16 {dimension_numbers = #tpu.dot_dimension_numbers<[1], [0], [0], [1], [0, 0, 1, 1], [], []>} : vector<2x32xf32>, vector<32x10xf32>, vector<2x10xf32> -> vector<2x10xf32>
    %c0_17 = arith.constant 0 : index
    %c0_18 = arith.constant 0 : index
    %44 = vector.load %arg7[%c0_17, %c0_18] : memref<1x10xf32, #tpu.memory_space<vmem>>, vector<1x10xf32>
    %45 = vector.broadcast %44 : vector<1x10xf32> to vector<2x10xf32>
    %46 = arith.addf %43, %45 : vector<2x10xf32>
    %c0_19 = arith.constant 0 : index
    %c0_20 = arith.constant 0 : index
    %47 = vector.load %arg8[%c0_19, %c0_20] : memref<2x10xf32, #tpu.memory_space<vmem>>, vector<2x10xf32>
    tpu.vector_store %arg8[%c0_19, %c0_20], %46 {strides = array<i32>} : memref<2x10xf32, #tpu.memory_space<vmem>>, vector<2x10xf32>,
    return
  }
  func.func @transform_0(%arg0: i32) -> (i32, i32) {
    %c0_i32 = arith.constant 0 : i32
    %c0_i32_0 = arith.constant 0 : i32
    return %arg0, %c0_i32 : i32, i32
  }
  func.func @transform_1(%arg0: i32) -> (i32, i32) {
    %c0_i32 = arith.constant 0 : i32
    %c0_i32_0 = arith.constant 0 : i32
    %c0_i32_1 = arith.constant 0 : i32
    return %c0_i32, %c0_i32_0 : i32, i32
  }
  func.func @transform_2(%arg0: i32) -> (i32, i32) {
    %c0_i32 = arith.constant 0 : i32
    %c0_i32_0 = arith.constant 0 : i32
    %c0_i32_1 = arith.constant 0 : i32
    return %c0_i32, %c0_i32_0 : i32, i32
  }
  func.func @transform_3(%arg0: i32) -> (i32, i32) {
    %c0_i32 = arith.constant 0 : i32
    %c0_i32_0 = arith.constant 0 : i32
    %c0_i32_1 = arith.constant 0 : i32
    return %c0_i32, %c0_i32_0 : i32, i32
  }
  func.func @transform_4(%arg0: i32) -> (i32, i32) {
    %c0_i32 = arith.constant 0 : i32
    %c0_i32_0 = arith.constant 0 : i32
    %c0_i32_1 = arith.constant 0 : i32
    return %c0_i32, %c0_i32_0 : i32, i32
  }
  func.func @transform_5(%arg0: i32) -> (i32, i32) {
    %c0_i32 = arith.constant 0 : i32
    %c0_i32_0 = arith.constant 0 : i32
    %c0_i32_1 = arith.constant 0 : i32
    return %c0_i32, %c0_i32_0 : i32, i32
  }
  func.func @transform_6(%arg0: i32) -> (i32, i32) {
    %c0_i32 = arith.constant 0 : i32
    %c0_i32_0 = arith.constant 0 : i32
    %c0_i32_1 = arith.constant 0 : i32
    return %c0_i32, %c0_i32_0 : i32, i32
  }
  func.func @transform_7(%arg0: i32) -> (i32, i32) {
    %c0_i32 = arith.constant 0 : i32
    %c0_i32_0 = arith.constant 0 : i32
    return %arg0, %c0_i32 : i32, i32
  }
}

</mosaic_0001>

<llo_original>
// kernel: nodropout1d_forward.1
$region0: #{nodropout1d_forward.1}
  #allocation0 [shape = 'u32[]', space=smem, size = 0x4, offset = 0x4, fixed_abs, tag = 'smem constant byte address 0x4 - core index']
  #allocation1 [shape = 'u32[144,128]{1,0:T(1,128)}', space=vmem, size = 0x12000, scoped, tag = 'internal scratch']
  %s0 = inlined_call_operand.vmem [shape: f32[2,429], index: 0, kind: input, shape index: {}]
  %s1 = inlined_call_operand.vmem [shape: f32[429,1024], index: 1, kind: input, shape index: {}]
  %s2 = inlined_call_operand.vmem [shape: f32[1,128], index: 2, kind: input, shape index: {}]
  %s3 = inlined_call_operand.vmem [shape: f32[128,32], index: 3, kind: input, shape index: {}]
  %s4 = inlined_call_operand.vmem [shape: f32[1,32], index: 4, kind: input, shape index: {}]
  %s5 = inlined_call_operand.vmem [shape: f32[32,10], index: 5, kind: input, shape index: {}]
  %s6 = inlined_call_operand.vmem [shape: f32[1,10], index: 6, kind: input, shape index: {}]
  %s7 = inlined_call_operand.hbm [shape: f32[2,10], index: 7, kind: output, shape index: {}]
  %s8 = sld [smem:[#allocation0]]
  $region38: #{nodropout1d_forward.1} parent=0
    _
  %s10 = ssub.s32 1, %s8
  %s11 = scalar_select 0, %s10, %s8
  $region1: #{nodropout1d_forward.1} parent=0
    #allocation2 [shape = 'u8[1024]{0}', space=vmem, size = 0x400, scoped, tag = 'output window, operand 0, single buffered']
    #allocation3 [shape = 's32[1]{0}', space=sflag, size = 0x4, scoped, tag = 'scoped memory for nodropout1d_forward.1']
    %12 = vsyncpa [#allocation3], 0
    // Predicated region
    $region2: #{nodropout1d_forward.1} parent=1 // pred_check
      _
    $region3: #{nodropout1d_forward.1} parent=1 // pred_check_branch
      %14 = sbr.rel (0) target = $region5
    $region4: #{nodropout1d_forward.1} parent=1 // pred_region
      _
    $region5: #{nodropout1d_forward.1} parent=1 // pred_fallthru
      _
    // Predicated region
    $region6: #{nodropout1d_forward.1} parent=1 // pred_check
      _
    $region7: #{nodropout1d_forward.1} parent=1 // pred_check_branch
      %16 = sbr.rel (0) target = $region9
    $region8: #{nodropout1d_forward.1} parent=1 // pred_region
      _
    $region9: #{nodropout1d_forward.1} parent=1 // pred_fallthru
      _
    // Predicated region
    $region10: #{nodropout1d_forward.1} parent=1 // pred_check
      _
    $region11: #{nodropout1d_forward.1} parent=1 // pred_check_branch
      %18 = sbr.rel (0) target = $region13
    $region12: #{nodropout1d_forward.1} parent=1 // pred_region
      _
    $region13: #{nodropout1d_forward.1} parent=1 // pred_fallthru
      _
    // Predicated region
    $region14: #{nodropout1d_forward.1} parent=1 // pred_check
      _
    $region15: #{nodropout1d_forward.1} parent=1 // pred_check_branch
      %20 = sbr.rel (0) target = $region17
    $region16: #{nodropout1d_forward.1} parent=1 // pred_region
      _
    $region17: #{nodropout1d_forward.1} parent=1 // pred_fallthru
      _
    // Predicated region
    $region18: #{nodropout1d_forward.1} parent=1 // pred_check
      _
    $region19: #{nodropout1d_forward.1} parent=1 // pred_check_branch
      %22 = sbr.rel (0) target = $region21
    $region20: #{nodropout1d_forward.1} parent=1 // pred_region
      _
    $region21: #{nodropout1d_forward.1} parent=1 // pred_fallthru
      _
    // Predicated region
    $region22: #{nodropout1d_forward.1} parent=1 // pred_check
      _
    $region23: #{nodropout1d_forward.1} parent=1 // pred_check_branch
      %24 = sbr.rel (0) target = $region25
    $region24: #{nodropout1d_forward.1} parent=1 // pred_region
      _
    $region25: #{nodropout1d_forward.1} parent=1 // pred_fallthru
      _
    // Predicated region
    $region26: #{nodropout1d_forward.1} parent=1 // pred_check
      _
    $region27: #{nodropout1d_forward.1} parent=1 // pred_check_branch
      %26 = sbr.rel (0) target = $region29
    $region28: #{nodropout1d_forward.1} parent=1 // pred_region
      _
    $region29: #{nodropout1d_forward.1} parent=1 // pred_fallthru
      _
    %v27 = vld [vmem:[%s0] sm:$0xff]
    %v28 = vld [vmem:[%s1] sm:$0xff]
    %v29 = vld [vmem:[%s1 + $0x8] sm:$0xff]
    %v30 = vld [vmem:[%s1 + $0x10] sm:$0xff]
    %v31 = vld [vmem:[%s1 + $0x18] sm:$0xff]
    %v32 = vld [vmem:[%s1 + $0x20] sm:$0xff]
    %v33 = vld [vmem:[%s1 + $0x28] sm:$0xff]
    %v34 = vld [vmem:[%s1 + $0x30] sm:$0xff]
    %v35 = vld [vmem:[%s1 + $0x38] sm:$0xff]
    %v36 = vld [vmem:[%s1 + $0x40] sm:$0xff]
    %v37 = vld [vmem:[%s1 + $0x48] sm:$0xff]
    %v38 = vld [vmem:[%s1 + $0x50] sm:$0xff]
    %v39 = vld [vmem:[%s1 + $0x58] sm:$0xff]
    %v40 = vld [vmem:[%s1 + $0x60] sm:$0xff]
    %v41 = vld [vmem:[%s1 + $0x68] sm:$0xff]
    %v42 = vld [vmem:[%s1 + $0x70] sm:$0xff]
    %v43 = vld [vmem:[%s1 + $0x78] sm:$0xff]
    %v44 = vld [vmem:[%s1 + $0x80] sm:$0xff]
    %v45 = vld [vmem:[%s1 + $0x88] sm:$0xff]
    %v46 = vld [vmem:[%s1 + $0x90] sm:$0xff]
    %v47 = vld [vmem:[%s1 + $0x98] sm:$0xff]
    %v48 = vld [vmem:[%s1 + $0xa0] sm:$0xff]
    %v49 = vld [vmem:[%s1 + $0xa8] sm:$0xff]
    %v50 = vld [vmem:[%s1 + $0xb0] sm:$0xff]
    %v51 = vld [vmem:[%s1 + $0xb8] sm:$0xff]
    %v52 = vld [vmem:[%s1 + $0xc0] sm:$0xff]
    %v53 = vld [vmem:[%s1 + $0xc8] sm:$0xff]
    %v54 = vld [vmem:[%s1 + $0xd0] sm:$0xff]
    %v55 = vld [vmem:[%s1 + $0xd8] sm:$0xff]
    %v56 = vld [vmem:[%s1 + $0xe0] sm:$0xff]
    %v57 = vld [vmem:[%s1 + $0xe8] sm:$0xff]
    %v58 = vld [vmem:[%s1 + $0xf0] sm:$0xff]
    %v59 = vld [vmem:[%s1 + $0xf8] sm:$0xff]
    %v60 = vld [vmem:[%s1 + $0x100] sm:$0xff]
    %v61 = vld [vmem:[%s1 + $0x108] sm:$0xff]
    %v62 = vld [vmem:[%s1 + $0x110] sm:$0xff]
    %v63 = vld [vmem:[%s1 + $0x118] sm:$0xff]
    %v64 = vld [vmem:[%s1 + $0x120] sm:$0xff]
    %v65 = vld [vmem:[%s1 + $0x128] sm:$0xff]
    %v66 = vld [vmem:[%s1 + $0x130] sm:$0xff]
    %v67 = vld [vmem:[%s1 + $0x138] sm:$0xff]
    %v68 = vld [vmem:[%s1 + $0x140] sm:$0xff]
    %v69 = vld [vmem:[%s1 + $0x148] sm:$0xff]
    %v70 = vld [vmem:[%s1 + $0x150] sm:$0xff]
    %v71 = vld [vmem:[%s1 + $0x158] sm:$0xff]
    %v72 = vld [vmem:[%s1 + $0x160] sm:$0xff]
    %v73 = vld [vmem:[%s1 + $0x168] sm:$0xff]
    %v74 = vld [vmem:[%s1 + $0x170] sm:$0xff]
    %v75 = vld [vmem:[%s1 + $0x178] sm:$0xff]
    %v76 = vld [vmem:[%s1 + $0x180] sm:$0xff]
    %v77 = vld [vmem:[%s1 + $0x188] sm:$0xff]
    %v78 = vld [vmem:[%s1 + $0x190] sm:$0xff]
    %v79 = vld [vmem:[%s1 + $0x198] sm:$0xff]
    %v80 = vld [vmem:[%s1 + $0x1a0] sm:$0xff]
    %v81 = vld [vmem:[%s1 + $0x1a8] sm:$0xff]
    %v82 = vld [vmem:[%s1 + $0x1b0] sm:$0xff]
    %v83 = vld [vmem:[%s1 + $0x1b8] sm:$0xff]
    %v84 = vld [vmem:[%s1 + $0x1c0] sm:$0xff]
    %v85 = vld [vmem:[%s1 + $0x1c8] sm:$0xff]
    %v86 = vld [vmem:[%s1 + $0x1d0] sm:$0xff]
    %v87 = vld [vmem:[%s1 + $0x1d8] sm:$0xff]
    %v88 = vld [vmem:[%s1 + $0x1e0] sm:$0xff]
    %v89 = vld [vmem:[%s1 + $0x1e8] sm:$0xff]
    %v90 = vld [vmem:[%s1 + $0x1f0] sm:$0xff]
    %v91 = vld [vmem:[%s1 + $0x1f8] sm:$0xff]
    %v92 = vld [vmem:[%s1 + $0x200] sm:$0xff]
    %v93 = vld [vmem:[%s1 + $0x208] sm:$0xff]
    %v94 = vld [vmem:[%s1 + $0x210] sm:$0xff]
    %v95 = vld [vmem:[%s1 + $0x218] sm:$0xff]
    %v96 = vld [vmem:[%s1 + $0x220] sm:$0xff]
    %v97 = vld [vmem:[%s1 + $0x228] sm:$0xff]
    %v98 = vld [vmem:[%s1 + $0x230] sm:$0xff]
    %v99 = vld [vmem:[%s1 + $0x238] sm:$0xff]
    %v100 = vld [vmem:[%s1 + $0x240] sm:$0xff]
    %v101 = vld [vmem:[%s1 + $0x248] sm:$0xff]
    %v102 = vld [vmem:[%s1 + $0x250] sm:$0xff]
    %v103 = vld [vmem:[%s1 + $0x258] sm:$0xff]
    %v104 = vld [vmem:[%s1 + $0x260] sm:$0xff]
    %v105 = vld [vmem:[%s1 + $0x268] sm:$0xff]
    %v106 = vld [vmem:[%s1 + $0x270] sm:$0xff]
    %v107 = vld [vmem:[%s1 + $0x278] sm:$0xff]
    %v108 = vld [vmem:[%s1 + $0x280] sm:$0xff]
    %v109 = vld [vmem:[%s1 + $0x288] sm:$0xff]
    %v110 = vld [vmem:[%s1 + $0x290] sm:$0xff]
    %v111 = vld [vmem:[%s1 + $0x298] sm:$0xff]
    %v112 = vld [vmem:[%s1 + $0x2a0] sm:$0xff]
    %v113 = vld [vmem:[%s1 + $0x2a8] sm:$0xff]
    %v114 = vld [vmem:[%s1 + $0x2b0] sm:$0xff]
    %v115 = vld [vmem:[%s1 + $0x2b8] sm:$0xff]
    %v116 = vld [vmem:[%s1 + $0x2c0] sm:$0xff]
    %v117 = vld [vmem:[%s1 + $0x2c8] sm:$0xff]
    %v118 = vld [vmem:[%s1 + $0x2d0] sm:$0xff]
    %v119 = vld [vmem:[%s1 + $0x2d8] sm:$0xff]
    %v120 = vld [vmem:[%s1 + $0x2e0] sm:$0xff]
    %v121 = vld [vmem:[%s1 + $0x2e8] sm:$0xff]
    %v122 = vld [vmem:[%s1 + $0x2f0] sm:$0xff]
    %v123 = vld [vmem:[%s1 + $0x2f8] sm:$0xff]
    %v124 = vld [vmem:[%s1 + $0x300] sm:$0xff]
    %v125 = vld [vmem:[%s1 + $0x308] sm:$0xff]
    %v126 = vld [vmem:[%s1 + $0x310] sm:$0xff]
    %v127 = vld [vmem:[%s1 + $0x318] sm:$0xff]
    %v128 = vld [vmem:[%s1 + $0x320] sm:$0xff]
    %v129 = vld [vmem:[%s1 + $0x328] sm:$0xff]
    %v130 = vld [vmem:[%s1 + $0x330] sm:$0xff]
    %v131 = vld [vmem:[%s1 + $0x338] sm:$0xff]
    %v132 = vld [vmem:[%s1 + $0x340] sm:$0xff]
    %v133 = vld [vmem:[%s1 + $0x348] sm:$0xff]
    %v134 = vld [vmem:[%s1 + $0x350] sm:$0xff]
    %v135 = vld [vmem:[%s1 + $0x358] sm:$0xff]
    %v136 = vld [vmem:[%s1 + $0x360] sm:$0xff]
    %v137 = vld [vmem:[%s1 + $0x368] sm:$0xff]
    %v138 = vld [vmem:[%s1 + $0x370] sm:$0xff]
    %v139 = vld [vmem:[%s1 + $0x378] sm:$0xff]
    %v140 = vld [vmem:[%s1 + $0x380] sm:$0xff]
    %v141 = vld [vmem:[%s1 + $0x388] sm:$0xff]
    %v142 = vld [vmem:[%s1 + $0x390] sm:$0xff]
    %v143 = vld [vmem:[%s1 + $0x398] sm:$0xff]
    %v144 = vld [vmem:[%s1 + $0x3a0] sm:$0xff]
    %v145 = vld [vmem:[%s1 + $0x3a8] sm:$0xff]
    %v146 = vld [vmem:[%s1 + $0x3b0] sm:$0xff]
    %v147 = vld [vmem:[%s1 + $0x3b8] sm:$0xff]
    %v148 = vld [vmem:[%s1 + $0x3c0] sm:$0xff]
    %v149 = vld [vmem:[%s1 + $0x3c8] sm:$0xff]
    %v150 = vld [vmem:[%s1 + $0x3d0] sm:$0xff]
    %v151 = vld [vmem:[%s1 + $0x3d8] sm:$0xff]
    %v152 = vld [vmem:[%s1 + $0x3e0] sm:$0xff]
    %v153 = vld [vmem:[%s1 + $0x3e8] sm:$0xff]
    %v154 = vld [vmem:[%s1 + $0x3f0] sm:$0xff]
    %v155 = vld [vmem:[%s1 + $0x3f8] sm:$0xff]
    %v156 = vld [vmem:[%s1 + $0x400] sm:$0xff]
    %v157 = vld [vmem:[%s1 + $0x408] sm:$0xff]
    %v158 = vld [vmem:[%s1 + $0x410] sm:$0xff]
    %v159 = vld [vmem:[%s1 + $0x418] sm:$0xff]
    %v160 = vld [vmem:[%s1 + $0x420] sm:$0xff]
    %v161 = vld [vmem:[%s1 + $0x428] sm:$0xff]
    %v162 = vld [vmem:[%s1 + $0x430] sm:$0xff]
    %v163 = vld [vmem:[%s1 + $0x438] sm:$0xff]
    %v164 = vld [vmem:[%s1 + $0x440] sm:$0xff]
    %v165 = vld [vmem:[%s1 + $0x448] sm:$0xff]
    %v166 = vld [vmem:[%s1 + $0x450] sm:$0xff]
    %v167 = vld [vmem:[%s1 + $0x458] sm:$0xff]
    %v168 = vld [vmem:[%s1 + $0x460] sm:$0xff]
    %v169 = vld [vmem:[%s1 + $0x468] sm:$0xff]
    %v170 = vld [vmem:[%s1 + $0x470] sm:$0xff]
    %v171 = vld [vmem:[%s1 + $0x478] sm:$0xff]
    %v172 = vld [vmem:[%s1 + $0x480] sm:$0xff]
    %v173 = vld [vmem:[%s1 + $0x488] sm:$0xff]
    %v174 = vld [vmem:[%s1 + $0x490] sm:$0xff]
    %v175 = vld [vmem:[%s1 + $0x498] sm:$0xff]
    %v176 = vld [vmem:[%s1 + $0x4a0] sm:$0xff]
    %v177 = vld [vmem:[%s1 + $0x4a8] sm:$0xff]
    %v178 = vld [vmem:[%s1 + $0x4b0] sm:$0xff]
    %v179 = vld [vmem:[%s1 + $0x4b8] sm:$0xff]
    %v180 = vld [vmem:[%s1 + $0x4c0] sm:$0xff]
    %v181 = vld [vmem:[%s1 + $0x4c8] sm:$0xff]
    %v182 = vld [vmem:[%s1 + $0x4d0] sm:$0xff]
    %v183 = vld [vmem:[%s1 + $0x4d8] sm:$0xff]
    %v184 = vld [vmem:[%s1 + $0x4e0] sm:$0xff]
    %v185 = vld [vmem:[%s1 + $0x4e8] sm:$0xff]
    %v186 = vld [vmem:[%s1 + $0x4f0] sm:$0xff]
    %v187 = vld [vmem:[%s1 + $0x4f8] sm:$0xff]
    %v188 = vld [vmem:[%s1 + $0x500] sm:$0xff]
    %v189 = vld [vmem:[%s1 + $0x508] sm:$0xff]
    %v190 = vld [vmem:[%s1 + $0x510] sm:$0xff]
    %v191 = vld [vmem:[%s1 + $0x518] sm:$0xff]
    %v192 = vld [vmem:[%s1 + $0x520] sm:$0xff]
    %v193 = vld [vmem:[%s1 + $0x528] sm:$0xff]
    %v194 = vld [vmem:[%s1 + $0x530] sm:$0xff]
    %v195 = vld [vmem:[%s1 + $0x538] sm:$0xff]
    %v196 = vld [vmem:[%s1 + $0x540] sm:$0xff]
    %v197 = vld [vmem:[%s1 + $0x548] sm:$0xff]
    %v198 = vld [vmem:[%s1 + $0x550] sm:$0xff]
    %v199 = vld [vmem:[%s1 + $0x558] sm:$0xff]
    %v200 = vld [vmem:[%s1 + $0x560] sm:$0xff]
    %v201 = vld [vmem:[%s1 + $0x568] sm:$0xff]
    %v202 = vld [vmem:[%s1 + $0x570] sm:$0xff]
    %v203 = vld [vmem:[%s1 + $0x578] sm:$0xff]
    %v204 = vld [vmem:[%s1 + $0x580] sm:$0xff]
    %v205 = vld [vmem:[%s1 + $0x588] sm:$0xff]
    %v206 = vld [vmem:[%s1 + $0x590] sm:$0xff]
    %v207 = vld [vmem:[%s1 + $0x598] sm:$0xff]
    %v208 = vld [vmem:[%s1 + $0x5a0] sm:$0xff]
    %v209 = vld [vmem:[%s1 + $0x5a8] sm:$0xff]
    %v210 = vld [vmem:[%s1 + $0x5b0] sm:$0xff]
    %v211 = vld [vmem:[%s1 + $0x5b8] sm:$0xff]
    %v212 = vld [vmem:[%s1 + $0x5c0] sm:$0xff]
    %v213 = vld [vmem:[%s1 + $0x5c8] sm:$0xff]
    %v214 = vld [vmem:[%s1 + $0x5d0] sm:$0xff]
    %v215 = vld [vmem:[%s1 + $0x5d8] sm:$0xff]
    %v216 = vld [vmem:[%s1 + $0x5e0] sm:$0xff]
    %v217 = vld [vmem:[%s1 + $0x5e8] sm:$0xff]
    %v218 = vld [vmem:[%s1 + $0x5f0] sm:$0xff]
    %v219 = vld [vmem:[%s1 + $0x5f8] sm:$0xff]
    %v220 = vld [vmem:[%s1 + $0x600] sm:$0xff]
    %v221 = vld [vmem:[%s1 + $0x608] sm:$0xff]
    %v222 = vld [vmem:[%s1 + $0x610] sm:$0xff]
    %v223 = vld [vmem:[%s1 + $0x618] sm:$0xff]
    %v224 = vld [vmem:[%s1 + $0x620] sm:$0xff]
    %v225 = vld [vmem:[%s1 + $0x628] sm:$0xff]
    %v226 = vld [vmem:[%s1 + $0x630] sm:$0xff]
    %v227 = vld [vmem:[%s1 + $0x638] sm:$0xff]
    %v228 = vld [vmem:[%s1 + $0x640] sm:$0xff]
    %v229 = vld [vmem:[%s1 + $0x648] sm:$0xff]
    %v230 = vld [vmem:[%s1 + $0x650] sm:$0xff]
    %v231 = vld [vmem:[%s1 + $0x658] sm:$0xff]
    %v232 = vld [vmem:[%s1 + $0x660] sm:$0xff]
    %v233 = vld [vmem:[%s1 + $0x668] sm:$0xff]
    %v234 = vld [vmem:[%s1 + $0x670] sm:$0xff]
    %v235 = vld [vmem:[%s1 + $0x678] sm:$0xff]
    %v236 = vld [vmem:[%s1 + $0x680] sm:$0xff]
    %v237 = vld [vmem:[%s1 + $0x688] sm:$0xff]
    %v238 = vld [vmem:[%s1 + $0x690] sm:$0xff]
    %v239 = vld [vmem:[%s1 + $0x698] sm:$0xff]
    %v240 = vld [vmem:[%s1 + $0x6a0] sm:$0xff]
    %v241 = vld [vmem:[%s1 + $0x6a8] sm:$0xff]
    %v242 = vld [vmem:[%s1 + $0x6b0] sm:$0xff]
    %v243 = vld [vmem:[%s1 + $0x6b8] sm:$0xff]
    %v244 = vld [vmem:[%s1 + $0x6c0] sm:$0xff]
    %v245 = vld [vmem:[%s1 + $0x6c8] sm:$0xff]
    %v246 = vld [vmem:[%s1 + $0x6d0] sm:$0xff]
    %v247 = vld [vmem:[%s1 + $0x6d8] sm:$0xff]
    %v248 = vld [vmem:[%s1 + $0x6e0] sm:$0xff]
    %v249 = vld [vmem:[%s1 + $0x6e8] sm:$0xff]
    %v250 = vld [vmem:[%s1 + $0x6f0] sm:$0xff]
    %v251 = vld [vmem:[%s1 + $0x6f8] sm:$0xff]
    %v252 = vld [vmem:[%s1 + $0x700] sm:$0xff]
    %v253 = vld [vmem:[%s1 + $0x708] sm:$0xff]
    %v254 = vld [vmem:[%s1 + $0x710] sm:$0xff]
    %v255 = vld [vmem:[%s1 + $0x718] sm:$0xff]
    %v256 = vld [vmem:[%s1 + $0x720] sm:$0xff]
    %v257 = vld [vmem:[%s1 + $0x728] sm:$0xff]
    %v258 = vld [vmem:[%s1 + $0x730] sm:$0xff]
    %v259 = vld [vmem:[%s1 + $0x738] sm:$0xff]
    %v260 = vld [vmem:[%s1 + $0x740] sm:$0xff]
    %v261 = vld [vmem:[%s1 + $0x748] sm:$0xff]
    %v262 = vld [vmem:[%s1 + $0x750] sm:$0xff]
    %v263 = vld [vmem:[%s1 + $0x758] sm:$0xff]
    %v264 = vld [vmem:[%s1 + $0x760] sm:$0xff]
    %v265 = vld [vmem:[%s1 + $0x768] sm:$0xff]
    %v266 = vld [vmem:[%s1 + $0x770] sm:$0xff]
    %v267 = vld [vmem:[%s1 + $0x778] sm:$0xff]
    %v268 = vld [vmem:[%s1 + $0x780] sm:$0xff]
    %v269 = vld [vmem:[%s1 + $0x788] sm:$0xff]
    %v270 = vld [vmem:[%s1 + $0x790] sm:$0xff]
    %v271 = vld [vmem:[%s1 + $0x798] sm:$0xff]
    %v272 = vld [vmem:[%s1 + $0x7a0] sm:$0xff]
    %v273 = vld [vmem:[%s1 + $0x7a8] sm:$0xff]
    %v274 = vld [vmem:[%s1 + $0x7b0] sm:$0xff]
    %v275 = vld [vmem:[%s1 + $0x7b8] sm:$0xff]
    %v276 = vld [vmem:[%s1 + $0x7c0] sm:$0xff]
    %v277 = vld [vmem:[%s1 + $0x7c8] sm:$0xff]
    %v278 = vld [vmem:[%s1 + $0x7d0] sm:$0xff]
    %v279 = vld [vmem:[%s1 + $0x7d8] sm:$0xff]
    %v280 = vld [vmem:[%s1 + $0x7e0] sm:$0xff]
    %v281 = vld [vmem:[%s1 + $0x7e8] sm:$0xff]
    %v282 = vld [vmem:[%s1 + $0x7f0] sm:$0xff]
    %v283 = vld [vmem:[%s1 + $0x7f8] sm:$0xff]
    %v284 = vld [vmem:[%s1 + $0x800] sm:$0xff]
    %v285 = vld [vmem:[%s1 + $0x808] sm:$0xff]
    %v286 = vld [vmem:[%s1 + $0x810] sm:$0xff]
    %v287 = vld [vmem:[%s1 + $0x818] sm:$0xff]
    %v288 = vld [vmem:[%s1 + $0x820] sm:$0xff]
    %v289 = vld [vmem:[%s1 + $0x828] sm:$0xff]
    %v290 = vld [vmem:[%s1 + $0x830] sm:$0xff]
    %v291 = vld [vmem:[%s1 + $0x838] sm:$0xff]
    %v292 = vld [vmem:[%s1 + $0x840] sm:$0xff]
    %v293 = vld [vmem:[%s1 + $0x848] sm:$0xff]
    %v294 = vld [vmem:[%s1 + $0x850] sm:$0xff]
    %v295 = vld [vmem:[%s1 + $0x858] sm:$0xff]
    %v296 = vld [vmem:[%s1 + $0x860] sm:$0xff]
    %v297 = vld [vmem:[%s1 + $0x868] sm:$0xff]
    %v298 = vld [vmem:[%s1 + $0x870] sm:$0xff]
    %v299 = vld [vmem:[%s1 + $0x878] sm:$0xff]
    %v300 = vld [vmem:[%s1 + $0x880] sm:$0xff]
    %v301 = vld [vmem:[%s1 + $0x888] sm:$0xff]
    %v302 = vld [vmem:[%s1 + $0x890] sm:$0xff]
    %v303 = vld [vmem:[%s1 + $0x898] sm:$0xff]
    %v304 = vld [vmem:[%s1 + $0x8a0] sm:$0xff]
    %v305 = vld [vmem:[%s1 + $0x8a8] sm:$0xff]
    %v306 = vld [vmem:[%s1 + $0x8b0] sm:$0xff]
    %v307 = vld [vmem:[%s1 + $0x8b8] sm:$0xff]
    %v308 = vld [vmem:[%s1 + $0x8c0] sm:$0xff]
    %v309 = vld [vmem:[%s1 + $0x8c8] sm:$0xff]
    %v310 = vld [vmem:[%s1 + $0x8d0] sm:$0xff]
    %v311 = vld [vmem:[%s1 + $0x8d8] sm:$0xff]
    %v312 = vld [vmem:[%s1 + $0x8e0] sm:$0xff]
    %v313 = vld [vmem:[%s1 + $0x8e8] sm:$0xff]
    %v314 = vld [vmem:[%s1 + $0x8f0] sm:$0xff]
    %v315 = vld [vmem:[%s1 + $0x8f8] sm:$0xff]
    %v316 = vld [vmem:[%s1 + $0x900] sm:$0xff]
    %v317 = vld [vmem:[%s1 + $0x908] sm:$0xff]
    %v318 = vld [vmem:[%s1 + $0x910] sm:$0xff]
    %v319 = vld [vmem:[%s1 + $0x918] sm:$0xff]
    %v320 = vld [vmem:[%s1 + $0x920] sm:$0xff]
    %v321 = vld [vmem:[%s1 + $0x928] sm:$0xff]
    %v322 = vld [vmem:[%s1 + $0x930] sm:$0xff]
    %v323 = vld [vmem:[%s1 + $0x938] sm:$0xff]
    %v324 = vld [vmem:[%s1 + $0x940] sm:$0xff]
    %v325 = vld [vmem:[%s1 + $0x948] sm:$0xff]
    %v326 = vld [vmem:[%s1 + $0x950] sm:$0xff]
    %v327 = vld [vmem:[%s1 + $0x958] sm:$0xff]
    %v328 = vld [vmem:[%s1 + $0x960] sm:$0xff]
    %v329 = vld [vmem:[%s1 + $0x968] sm:$0xff]
    %v330 = vld [vmem:[%s1 + $0x970] sm:$0xff]
    %v331 = vld [vmem:[%s1 + $0x978] sm:$0xff]
    %v332 = vld [vmem:[%s1 + $0x980] sm:$0xff]
    %v333 = vld [vmem:[%s1 + $0x988] sm:$0xff]
    %v334 = vld [vmem:[%s1 + $0x990] sm:$0xff]
    %v335 = vld [vmem:[%s1 + $0x998] sm:$0xff]
    %v336 = vld [vmem:[%s1 + $0x9a0] sm:$0xff]
    %v337 = vld [vmem:[%s1 + $0x9a8] sm:$0xff]
    %v338 = vld [vmem:[%s1 + $0x9b0] sm:$0xff]
    %v339 = vld [vmem:[%s1 + $0x9b8] sm:$0xff]
    %v340 = vld [vmem:[%s1 + $0x9c0] sm:$0xff]
    %v341 = vld [vmem:[%s1 + $0x9c8] sm:$0xff]
    %v342 = vld [vmem:[%s1 + $0x9d0] sm:$0xff]
    %v343 = vld [vmem:[%s1 + $0x9d8] sm:$0xff]
    %v344 = vld [vmem:[%s1 + $0x9e0] sm:$0xff]
    %v345 = vld [vmem:[%s1 + $0x9e8] sm:$0xff]
    %v346 = vld [vmem:[%s1 + $0x9f0] sm:$0xff]
    %v347 = vld [vmem:[%s1 + $0x9f8] sm:$0xff]
    %v348 = vld [vmem:[%s1 + $0xa00] sm:$0xff]
    %v349 = vld [vmem:[%s1 + $0xa08] sm:$0xff]
    %v350 = vld [vmem:[%s1 + $0xa10] sm:$0xff]
    %v351 = vld [vmem:[%s1 + $0xa18] sm:$0xff]
    %v352 = vld [vmem:[%s1 + $0xa20] sm:$0xff]
    %v353 = vld [vmem:[%s1 + $0xa28] sm:$0xff]
    %v354 = vld [vmem:[%s1 + $0xa30] sm:$0xff]
    %v355 = vld [vmem:[%s1 + $0xa38] sm:$0xff]
    %v356 = vld [vmem:[%s1 + $0xa40] sm:$0xff]
    %v357 = vld [vmem:[%s1 + $0xa48] sm:$0xff]
    %v358 = vld [vmem:[%s1 + $0xa50] sm:$0xff]
    %v359 = vld [vmem:[%s1 + $0xa58] sm:$0xff]
    %v360 = vld [vmem:[%s1 + $0xa60] sm:$0xff]
    %v361 = vld [vmem:[%s1 + $0xa68] sm:$0xff]
    %v362 = vld [vmem:[%s1 + $0xa70] sm:$0xff]
    %v363 = vld [vmem:[%s1 + $0xa78] sm:$0xff]
    %v364 = vld [vmem:[%s1 + $0xa80] sm:$0xff]
    %v365 = vld [vmem:[%s1 + $0xa88] sm:$0xff]
    %v366 = vld [vmem:[%s1 + $0xa90] sm:$0xff]
    %v367 = vld [vmem:[%s1 + $0xa98] sm:$0xff]
    %v368 = vld [vmem:[%s1 + $0xaa0] sm:$0xff]
    %v369 = vld [vmem:[%s1 + $0xaa8] sm:$0xff]
    %v370 = vld [vmem:[%s1 + $0xab0] sm:$0xff]
    %v371 = vld [vmem:[%s1 + $0xab8] sm:$0xff]
    %v372 = vld [vmem:[%s1 + $0xac0] sm:$0xff]
    %v373 = vld [vmem:[%s1 + $0xac8] sm:$0xff]
    %v374 = vld [vmem:[%s1 + $0xad0] sm:$0xff]
    %v375 = vld [vmem:[%s1 + $0xad8] sm:$0xff]
    %v376 = vld [vmem:[%s1 + $0xae0] sm:$0xff]
    %v377 = vld [vmem:[%s1 + $0xae8] sm:$0xff]
    %v378 = vld [vmem:[%s1 + $0xaf0] sm:$0xff]
    %v379 = vld [vmem:[%s1 + $0xaf8] sm:$0xff]
    %v380 = vld [vmem:[%s1 + $0xb00] sm:$0xff]
    %v381 = vld [vmem:[%s1 + $0xb08] sm:$0xff]
    %v382 = vld [vmem:[%s1 + $0xb10] sm:$0xff]
    %v383 = vld [vmem:[%s1 + $0xb18] sm:$0xff]
    %v384 = vld [vmem:[%s1 + $0xb20] sm:$0xff]
    %v385 = vld [vmem:[%s1 + $0xb28] sm:$0xff]
    %v386 = vld [vmem:[%s1 + $0xb30] sm:$0xff]
    %v387 = vld [vmem:[%s1 + $0xb38] sm:$0xff]
    %v388 = vld [vmem:[%s1 + $0xb40] sm:$0xff]
    %v389 = vld [vmem:[%s1 + $0xb48] sm:$0xff]
    %v390 = vld [vmem:[%s1 + $0xb50] sm:$0xff]
    %v391 = vld [vmem:[%s1 + $0xb58] sm:$0xff]
    %v392 = vld [vmem:[%s1 + $0xb60] sm:$0xff]
    %v393 = vld [vmem:[%s1 + $0xb68] sm:$0xff]
    %v394 = vld [vmem:[%s1 + $0xb70] sm:$0xff]
    %v395 = vld [vmem:[%s1 + $0xb78] sm:$0xff]
    %v396 = vld [vmem:[%s1 + $0xb80] sm:$0xff]
    %v397 = vld [vmem:[%s1 + $0xb88] sm:$0xff]
    %v398 = vld [vmem:[%s1 + $0xb90] sm:$0xff]
    %v399 = vld [vmem:[%s1 + $0xb98] sm:$0xff]
    %v400 = vld [vmem:[%s1 + $0xba0] sm:$0xff]
    %v401 = vld [vmem:[%s1 + $0xba8] sm:$0xff]
    %v402 = vld [vmem:[%s1 + $0xbb0] sm:$0xff]
    %v403 = vld [vmem:[%s1 + $0xbb8] sm:$0xff]
    %v404 = vld [vmem:[%s1 + $0xbc0] sm:$0xff]
    %v405 = vld [vmem:[%s1 + $0xbc8] sm:$0xff]
    %v406 = vld [vmem:[%s1 + $0xbd0] sm:$0xff]
    %v407 = vld [vmem:[%s1 + $0xbd8] sm:$0xff]
    %v408 = vld [vmem:[%s1 + $0xbe0] sm:$0xff]
    %v409 = vld [vmem:[%s1 + $0xbe8] sm:$0xff]
    %v410 = vld [vmem:[%s1 + $0xbf0] sm:$0xff]
    %v411 = vld [vmem:[%s1 + $0xbf8] sm:$0xff]
    %v412 = vld [vmem:[%s1 + $0xc00] sm:$0xff]
    %v413 = vld [vmem:[%s1 + $0xc08] sm:$0xff]
    %v414 = vld [vmem:[%s1 + $0xc10] sm:$0xff]
    %v415 = vld [vmem:[%s1 + $0xc18] sm:$0xff]
    %v416 = vld [vmem:[%s1 + $0xc20] sm:$0xff]
    %v417 = vld [vmem:[%s1 + $0xc28] sm:$0xff]
    %v418 = vld [vmem:[%s1 + $0xc30] sm:$0xff]
    %v419 = vld [vmem:[%s1 + $0xc38] sm:$0xff]
    %v420 = vld [vmem:[%s1 + $0xc40] sm:$0xff]
    %v421 = vld [vmem:[%s1 + $0xc48] sm:$0xff]
    %v422 = vld [vmem:[%s1 + $0xc50] sm:$0xff]
    %v423 = vld [vmem:[%s1 + $0xc58] sm:$0xff]
    %v424 = vld [vmem:[%s1 + $0xc60] sm:$0xff]
    %v425 = vld [vmem:[%s1 + $0xc68] sm:$0xff]
    %v426 = vld [vmem:[%s1 + $0xc70] sm:$0xff]
    %v427 = vld [vmem:[%s1 + $0xc78] sm:$0xff]
    %v428 = vld [vmem:[%s1 + $0xc80] sm:$0xff]
    %v429 = vld [vmem:[%s1 + $0xc88] sm:$0xff]
    %v430 = vld [vmem:[%s1 + $0xc90] sm:$0xff]
    %v431 = vld [vmem:[%s1 + $0xc98] sm:$0xff]
    %v432 = vld [vmem:[%s1 + $0xca0] sm:$0xff]
    %v433 = vld [vmem:[%s1 + $0xca8] sm:$0xff]
    %v434 = vld [vmem:[%s1 + $0xcb0] sm:$0xff]
    %v435 = vld [vmem:[%s1 + $0xcb8] sm:$0xff]
    %v436 = vld [vmem:[%s1 + $0xcc0] sm:$0xff]
    %v437 = vld [vmem:[%s1 + $0xcc8] sm:$0xff]
    %v438 = vld [vmem:[%s1 + $0xcd0] sm:$0xff]
    %v439 = vld [vmem:[%s1 + $0xcd8] sm:$0xff]
    %v440 = vld [vmem:[%s1 + $0xce0] sm:$0xff]
    %v441 = vld [vmem:[%s1 + $0xce8] sm:$0xff]
    %v442 = vld [vmem:[%s1 + $0xcf0] sm:$0xff]
    %v443 = vld [vmem:[%s1 + $0xcf8] sm:$0xff]
    %v444 = vld [vmem:[%s1 + $0xd00] sm:$0xff]
    %v445 = vld [vmem:[%s1 + $0xd08] sm:$0xff]
    %v446 = vld [vmem:[%s1 + $0xd10] sm:$0xff]
    %v447 = vld [vmem:[%s1 + $0xd18] sm:$0xff]
    %v448 = vld [vmem:[%s1 + $0xd20] sm:$0xff]
    %v449 = vld [vmem:[%s1 + $0xd28] sm:$0xff]
    %v450 = vld [vmem:[%s1 + $0xd30] sm:$0xff]
    %v451 = vld [vmem:[%s1 + $0xd38] sm:$0xff]
    %v452 = vld [vmem:[%s1 + $0xd40] sm:$0x1f]
    %v453 = vld [vmem:[%s1 + $0xd48] sm:$0x1f]
    %v454 = vld [vmem:[%s1 + $0xd50] sm:$0x1f]
    %v455 = vld [vmem:[%s1 + $0xd58] sm:$0x1f]
    %v456 = vld [vmem:[%s1 + $0xd60] sm:$0x1f]
    %v457 = vld [vmem:[%s1 + $0xd68] sm:$0x1f]
    %v458 = vld [vmem:[%s1 + $0xd70] sm:$0x1f]
    %v459 = vld [vmem:[%s1 + $0xd78] sm:$0x1f]
    %v461 = vcombine.high %v27, %v27
    %v463 = vunpack.c.l.s4 1983009808
    %v464 = vunpack.c.0.s8 %v463
    %v465 = vlaneseq
    %v466 = vshrl.u32 %v465, 7
    %v467 = vsub.s32 %v464, %v466
    %v468 = vrot.slane %v27, %v467
    %v470 = vunpack.c.l.s4 1983009808
    %v471 = vunpack.c.0.s8 %v470
    %v472 = vlaneseq
    %v473 = vshrl.u32 %v472, 7
    %v474 = vsub.s32 %v471, %v473
    %v475 = vrot.slane %v461, %v474
    %v476 = vcombine.high %v468, %v468
    %v477 = vcombine.high %v475, %v475
    %vm481 = vcmask 367616
    %v482 = vsel %vm481, %v477, 0
    %vm484 = vcmask 1044480
    %v486 = vsel %vm484, %v452, 0
    %v489 = vsel %vm484, %v453, 0
    %v492 = vsel %vm484, %v454, 0
    %v495 = vsel %vm484, %v455, 0
    %v498 = vsel %vm484, %v456, 0
    %v501 = vsel %vm484, %v457, 0
    %v504 = vsel %vm484, %v458, 0
    %v507 = vsel %vm484, %v459, 0
    %509 = vmatprep.subr.mxu0 %v29
    %510 = vmatpush1.msra.mxu0 %v28
    %511 = vmatprep.subr.mxu0 %v37
    %512 = vmatpush1.msra.mxu0 %v36
    %513 = vmatprep.subr.mxu0 %v45
    %514 = vmatpush1.msra.mxu0 %v44
    %515 = vmatprep.subr.mxu0 %v53
    %516 = vmatpush1.msra.mxu0 %v52
    %517 = vmatprep.subr.mxu0 %v61
    %518 = vmatpush1.msra.mxu0 %v60
    %519 = vmatprep.subr.mxu0 %v69
    %520 = vmatpush1.msra.mxu0 %v68
    %521 = vmatprep.subr.mxu0 %v77
    %522 = vmatpush1.msra.mxu0 %v76
    %523 = vmatprep.subr.mxu0 %v85
    %524 = vmatpush1.msra.mxu0 %v84
    %525 = vmatprep.subr.mxu0 %v93
    %526 = vmatpush1.msra.mxu0 %v92
    %527 = vmatprep.subr.mxu0 %v101
    %528 = vmatpush1.msra.mxu0 %v100
    %529 = vmatprep.subr.mxu0 %v109
    %530 = vmatpush1.msra.mxu0 %v108
    %531 = vmatprep.subr.mxu0 %v117
    %532 = vmatpush1.msra.mxu0 %v116
    %533 = vmatprep.subr.mxu0 %v125
    %534 = vmatpush1.msra.mxu0 %v124
    %535 = vmatprep.subr.mxu0 %v133
    %536 = vmatpush1.msra.mxu0 %v132
    %537 = vmatprep.subr.mxu0 %v141
    %538 = vmatpush1.msra.mxu0 %v140
    %539 = vmatprep.subr.mxu0 %v149
    %540 = vmatpush1.msra.mxu0 %v148
    %541 = vmatprep.subr.mxu0 %v157
    %542 = vmatpush1.msra.mxu0 %v156
    %543 = vmatprep.subr.mxu0 %v165
    %544 = vmatpush1.msra.mxu0 %v164
    %545 = vmatprep.subr.mxu0 %v173
    %546 = vmatpush1.msra.mxu0 %v172
    %547 = vmatprep.subr.mxu0 %v181
    %548 = vmatpush1.msra.mxu0 %v180
    %549 = vmatprep.subr.mxu0 %v189
    %550 = vmatpush1.msra.mxu0 %v188
    %551 = vmatprep.subr.mxu0 %v197
    %552 = vmatpush1.msra.mxu0 %v196
    %553 = vmatprep.subr.mxu0 %v205
    %554 = vmatpush1.msra.mxu0 %v204
    %555 = vmatprep.subr.mxu0 %v213
    %556 = vmatpush1.msra.mxu0 %v212
    %557 = vmatprep.subr.mxu0 %v221
    %558 = vmatpush1.msra.mxu0 %v220
    %559 = vmatprep.subr.mxu0 %v229
    %560 = vmatpush1.msra.mxu0 %v228
    %561 = vmatprep.subr.mxu0 %v237
    %562 = vmatpush1.msra.mxu0 %v236
    %563 = vmatprep.subr.mxu0 %v245
    %564 = vmatpush1.msra.mxu0 %v244
    %565 = vmatprep.subr.mxu0 %v253
    %566 = vmatpush1.msra.mxu0 %v252
    %567 = vmatprep.subr.mxu0 %v261
    %568 = vmatpush1.msra.mxu0 %v260
    %569 = vmatprep.subr.mxu0 %v269
    %570 = vmatpush1.msra.mxu0 %v268
    %571 = vmatprep.subr.mxu0 %v277
    %572 = vmatpush1.msra.mxu0 %v276
    %573 = vmatprep.mubr.f32.mxu0 %v476
    %574 = vmatmul.mubr.f32.gmra.mrb[0].mxu0 %v468
    %v575 = vpop.f32.mrb[0].mxu0
    %v576 = vadd.f32 0.0, %v575
    %v577 = vpop.f32.mrb[0].mxu0
    %v578 = vadd.f32 0.0, %v577
    %579 = vdwg.mxu0
    %580 = vmatprep.subr.mxu0 %v285
    %581 = vmatpush1.msra.mxu0 %v284
    %582 = vmatprep.subr.mxu0 %v293
    %583 = vmatpush1.msra.mxu0 %v292
    %584 = vmatprep.subr.mxu0 %v301
    %585 = vmatpush1.msra.mxu0 %v300
    %586 = vmatprep.subr.mxu0 %v309
    %587 = vmatpush1.msra.mxu0 %v308
    %588 = vmatprep.subr.mxu0 %v317
    %589 = vmatpush1.msra.mxu0 %v316
    %590 = vmatprep.subr.mxu0 %v325
    %591 = vmatpush1.msra.mxu0 %v324
    %592 = vmatprep.subr.mxu0 %v333
    %593 = vmatpush1.msra.mxu0 %v332
    %594 = vmatprep.subr.mxu0 %v341
    %595 = vmatpush1.msra.mxu0 %v340
    %596 = vmatprep.subr.mxu0 %v349
    %597 = vmatpush1.msra.mxu0 %v348
    %598 = vmatprep.subr.mxu0 %v357
    %599 = vmatpush1.msra.mxu0 %v356
    %600 = vmatprep.subr.mxu0 %v365
    %601 = vmatpush1.msra.mxu0 %v364
    %602 = vmatprep.subr.mxu0 %v373
    %603 = vmatpush1.msra.mxu0 %v372
    %604 = vmatprep.subr.mxu0 %v381
    %605 = vmatpush1.msra.mxu0 %v380
    %606 = vmatprep.subr.mxu0 %v389
    %607 = vmatpush1.msra.mxu0 %v388
    %608 = vmatprep.subr.mxu0 %v397
    %609 = vmatpush1.msra.mxu0 %v396
    %610 = vmatprep.subr.mxu0 %v405
    %611 = vmatpush1.msra.mxu0 %v404
    %612 = vmatprep.subr.mxu0 %v413
    %613 = vmatpush1.msra.mxu0 %v412
    %614 = vmatprep.subr.mxu0 %v421
    %615 = vmatpush1.msra.mxu0 %v420
    %616 = vmatprep.subr.mxu0 %v429
    %617 = vmatpush1.msra.mxu0 %v428
    %618 = vmatprep.subr.mxu0 %v437
    %619 = vmatpush1.msra.mxu0 %v436
    %620 = vmatprep.subr.mxu0 %v445
    %621 = vmatpush1.msra.mxu0 %v444
    %622 = vmatprep.subr.mxu0 %v489
    %623 = vmatpush1.msra.mxu0 %v486
    %624 = vmatprep.subr.mxu0 0.0
    %625 = vmatpush1.msra.mxu0 0.0
    %626 = vmatprep.subr.mxu0 0.0
    %627 = vmatpush1.msra.mxu0 0.0
    %628 = vmatprep.subr.mxu0 0.0
    %629 = vmatpush1.msra.mxu0 0.0
    %630 = vmatprep.subr.mxu0 0.0
    %631 = vmatpush1.msra.mxu0 0.0
    %632 = vmatprep.subr.mxu0 0.0
    %633 = vmatpush1.msra.mxu0 0.0
    %634 = vmatprep.subr.mxu0 0.0
    %635 = vmatpush1.msra.mxu0 0.0
    %636 = vmatprep.subr.mxu0 0.0
    %637 = vmatpush1.msra.mxu0 0.0
    %638 = vmatprep.subr.mxu0 0.0
    %639 = vmatpush1.msra.mxu0 0.0
    %640 = vmatprep.subr.mxu0 0.0
    %641 = vmatpush1.msra.mxu0 0.0
    %642 = vmatprep.subr.mxu0 0.0
    %643 = vmatpush1.msra.mxu0 0.0
    %644 = vmatprep.mubr.f32.mxu0 %v482
    %645 = vmatmul.mubr.f32.gmra.mrb[0].mxu0 %v475
    %v646 = vpop.f32.mrb[0].mxu0
    %v647 = vadd.f32 %v576, %v646
    %v648 = vpop.f32.mrb[0].mxu0
    %v649 = vadd.f32 %v578, %v648
    %650 = vdwg.mxu0
    %651 = vmatprep.subr.mxu0 %v31
    %652 = vmatpush1.msra.mxu0 %v30
    %653 = vmatprep.subr.mxu0 %v39
    %654 = vmatpush1.msra.mxu0 %v38
    %655 = vmatprep.subr.mxu0 %v47
    %656 = vmatpush1.msra.mxu0 %v46
    %657 = vmatprep.subr.mxu0 %v55
    %658 = vmatpush1.msra.mxu0 %v54
    %659 = vmatprep.subr.mxu0 %v63
    %660 = vmatpush1.msra.mxu0 %v62
    %661 = vmatprep.subr.mxu0 %v71
    %662 = vmatpush1.msra.mxu0 %v70
    %663 = vmatprep.subr.mxu0 %v79
    %664 = vmatpush1.msra.mxu0 %v78
    %665 = vmatprep.subr.mxu0 %v87
    %666 = vmatpush1.msra.mxu0 %v86
    %667 = vmatprep.subr.mxu0 %v95
    %668 = vmatpush1.msra.mxu0 %v94
    %669 = vmatprep.subr.mxu0 %v103
    %670 = vmatpush1.msra.mxu0 %v102
    %671 = vmatprep.subr.mxu0 %v111
    %672 = vmatpush1.msra.mxu0 %v110
    %673 = vmatprep.subr.mxu0 %v119
    %674 = vmatpush1.msra.mxu0 %v118
    %675 = vmatprep.subr.mxu0 %v127
    %676 = vmatpush1.msra.mxu0 %v126
    %677 = vmatprep.subr.mxu0 %v135
    %678 = vmatpush1.msra.mxu0 %v134
    %679 = vmatprep.subr.mxu0 %v143
    %680 = vmatpush1.msra.mxu0 %v142
    %681 = vmatprep.subr.mxu0 %v151
    %682 = vmatpush1.msra.mxu0 %v150
    %683 = vmatprep.subr.mxu0 %v159
    %684 = vmatpush1.msra.mxu0 %v158
    %685 = vmatprep.subr.mxu0 %v167
    %686 = vmatpush1.msra.mxu0 %v166
    %687 = vmatprep.subr.mxu0 %v175
    %688 = vmatpush1.msra.mxu0 %v174
    %689 = vmatprep.subr.mxu0 %v183
    %690 = vmatpush1.msra.mxu0 %v182
    %691 = vmatprep.subr.mxu0 %v191
    %692 = vmatpush1.msra.mxu0 %v190
    %693 = vmatprep.subr.mxu0 %v199
    %694 = vmatpush1.msra.mxu0 %v198
    %695 = vmatprep.subr.mxu0 %v207
    %696 = vmatpush1.msra.mxu0 %v206
    %697 = vmatprep.subr.mxu0 %v215
    %698 = vmatpush1.msra.mxu0 %v214
    %699 = vmatprep.subr.mxu0 %v223
    %700 = vmatpush1.msra.mxu0 %v222
    %701 = vmatprep.subr.mxu0 %v231
    %702 = vmatpush1.msra.mxu0 %v230
    %703 = vmatprep.subr.mxu0 %v239
    %704 = vmatpush1.msra.mxu0 %v238
    %705 = vmatprep.subr.mxu0 %v247
    %706 = vmatpush1.msra.mxu0 %v246
    %707 = vmatprep.subr.mxu0 %v255
    %708 = vmatpush1.msra.mxu0 %v254
    %709 = vmatprep.subr.mxu0 %v263
    %710 = vmatpush1.msra.mxu0 %v262
    %711 = vmatprep.subr.mxu0 %v271
    %712 = vmatpush1.msra.mxu0 %v270
    %713 = vmatprep.subr.mxu0 %v279
    %714 = vmatpush1.msra.mxu0 %v278
    %715 = vmatprep.mubr.f32.mxu0 %v476
    %716 = vmatmul.mubr.f32.gmra.mrb[0].mxu0 %v468
    %v717 = vpop.f32.mrb[0].mxu0
    %v718 = vadd.f32 0.0, %v717
    %v719 = vpop.f32.mrb[0].mxu0
    %v720 = vadd.f32 0.0, %v719
    %721 = vdwg.mxu0
    %722 = vmatprep.subr.mxu0 %v287
    %723 = vmatpush1.msra.mxu0 %v286
    %724 = vmatprep.subr.mxu0 %v295
    %725 = vmatpush1.msra.mxu0 %v294
    %726 = vmatprep.subr.mxu0 %v303
    %727 = vmatpush1.msra.mxu0 %v302
    %728 = vmatprep.subr.mxu0 %v311
    %729 = vmatpush1.msra.mxu0 %v310
    %730 = vmatprep.subr.mxu0 %v319
    %731 = vmatpush1.msra.mxu0 %v318
    %732 = vmatprep.subr.mxu0 %v327
    %733 = vmatpush1.msra.mxu0 %v326
    %734 = vmatprep.subr.mxu0 %v335
    %735 = vmatpush1.msra.mxu0 %v334
    %736 = vmatprep.subr.mxu0 %v343
    %737 = vmatpush1.msra.mxu0 %v342
    %738 = vmatprep.subr.mxu0 %v351
    %739 = vmatpush1.msra.mxu0 %v350
    %740 = vmatprep.subr.mxu0 %v359
    %741 = vmatpush1.msra.mxu0 %v358
    %742 = vmatprep.subr.mxu0 %v367
    %743 = vmatpush1.msra.mxu0 %v366
    %744 = vmatprep.subr.mxu0 %v375
    %745 = vmatpush1.msra.mxu0 %v374
    %746 = vmatprep.subr.mxu0 %v383
    %747 = vmatpush1.msra.mxu0 %v382
    %748 = vmatprep.subr.mxu0 %v391
    %749 = vmatpush1.msra.mxu0 %v390
    %750 = vmatprep.subr.mxu0 %v399
    %751 = vmatpush1.msra.mxu0 %v398
    %752 = vmatprep.subr.mxu0 %v407
    %753 = vmatpush1.msra.mxu0 %v406
    %754 = vmatprep.subr.mxu0 %v415
    %755 = vmatpush1.msra.mxu0 %v414
    %756 = vmatprep.subr.mxu0 %v423
    %757 = vmatpush1.msra.mxu0 %v422
    %758 = vmatprep.subr.mxu0 %v431
    %759 = vmatpush1.msra.mxu0 %v430
    %760 = vmatprep.subr.mxu0 %v439
    %761 = vmatpush1.msra.mxu0 %v438
    %762 = vmatprep.subr.mxu0 %v447
    %763 = vmatpush1.msra.mxu0 %v446
    %764 = vmatprep.subr.mxu0 %v495
    %765 = vmatpush1.msra.mxu0 %v492
    %766 = vmatprep.subr.mxu0 0.0
    %767 = vmatpush1.msra.mxu0 0.0
    %768 = vmatprep.subr.mxu0 0.0
    %769 = vmatpush1.msra.mxu0 0.0
    %770 = vmatprep.subr.mxu0 0.0
    %771 = vmatpush1.msra.mxu0 0.0
    %772 = vmatprep.subr.mxu0 0.0
    %773 = vmatpush1.msra.mxu0 0.0
    %774 = vmatprep.subr.mxu0 0.0
    %775 = vmatpush1.msra.mxu0 0.0
    %776 = vmatprep.subr.mxu0 0.0
    %777 = vmatpush1.msra.mxu0 0.0
    %778 = vmatprep.subr.mxu0 0.0
    %779 = vmatpush1.msra.mxu0 0.0
    %780 = vmatprep.subr.mxu0 0.0
    %781 = vmatpush1.msra.mxu0 0.0
    %782 = vmatprep.subr.mxu0 0.0
    %783 = vmatpush1.msra.mxu0 0.0
    %784 = vmatprep.subr.mxu0 0.0
    %785 = vmatpush1.msra.mxu0 0.0
    %786 = vmatprep.mubr.f32.mxu0 %v482
    %787 = vmatmul.mubr.f32.gmra.mrb[0].mxu0 %v475
    %v788 = vpop.f32.mrb[0].mxu0
    %v789 = vadd.f32 %v718, %v788
    %v790 = vpop.f32.mrb[0].mxu0
    %v791 = vadd.f32 %v720, %v790
    %792 = vdwg.mxu0
    %793 = vmatprep.subr.mxu0 %v33
    %794 = vmatpush1.msra.mxu0 %v32
    %795 = vmatprep.subr.mxu0 %v41
    %796 = vmatpush1.msra.mxu0 %v40
    %797 = vmatprep.subr.mxu0 %v49
    %798 = vmatpush1.msra.mxu0 %v48
    %799 = vmatprep.subr.mxu0 %v57
    %800 = vmatpush1.msra.mxu0 %v56
    %801 = vmatprep.subr.mxu0 %v65
    %802 = vmatpush1.msra.mxu0 %v64
    %803 = vmatprep.subr.mxu0 %v73
    %804 = vmatpush1.msra.mxu0 %v72
    %805 = vmatprep.subr.mxu0 %v81
    %806 = vmatpush1.msra.mxu0 %v80
    %807 = vmatprep.subr.mxu0 %v89
    %808 = vmatpush1.msra.mxu0 %v88
    %809 = vmatprep.subr.mxu0 %v97
    %810 = vmatpush1.msra.mxu0 %v96
    %811 = vmatprep.subr.mxu0 %v105
    %812 = vmatpush1.msra.mxu0 %v104
    %813 = vmatprep.subr.mxu0 %v113
    %814 = vmatpush1.msra.mxu0 %v112
    %815 = vmatprep.subr.mxu0 %v121
    %816 = vmatpush1.msra.mxu0 %v120
    %817 = vmatprep.subr.mxu0 %v129
    %818 = vmatpush1.msra.mxu0 %v128
    %819 = vmatprep.subr.mxu0 %v137
    %820 = vmatpush1.msra.mxu0 %v136
    %821 = vmatprep.subr.mxu0 %v145
    %822 = vmatpush1.msra.mxu0 %v144
    %823 = vmatprep.subr.mxu0 %v153
    %824 = vmatpush1.msra.mxu0 %v152
    %825 = vmatprep.subr.mxu0 %v161
    %826 = vmatpush1.msra.mxu0 %v160
    %827 = vmatprep.subr.mxu0 %v169
    %828 = vmatpush1.msra.mxu0 %v168
    %829 = vmatprep.subr.mxu0 %v177
    %830 = vmatpush1.msra.mxu0 %v176
    %831 = vmatprep.subr.mxu0 %v185
    %832 = vmatpush1.msra.mxu0 %v184
    %833 = vmatprep.subr.mxu0 %v193
    %834 = vmatpush1.msra.mxu0 %v192
    %835 = vmatprep.subr.mxu0 %v201
    %836 = vmatpush1.msra.mxu0 %v200
    %837 = vmatprep.subr.mxu0 %v209
    %838 = vmatpush1.msra.mxu0 %v208
    %839 = vmatprep.subr.mxu0 %v217
    %840 = vmatpush1.msra.mxu0 %v216
    %841 = vmatprep.subr.mxu0 %v225
    %842 = vmatpush1.msra.mxu0 %v224
    %843 = vmatprep.subr.mxu0 %v233
    %844 = vmatpush1.msra.mxu0 %v232
    %845 = vmatprep.subr.mxu0 %v241
    %846 = vmatpush1.msra.mxu0 %v240
    %847 = vmatprep.subr.mxu0 %v249
    %848 = vmatpush1.msra.mxu0 %v248
    %849 = vmatprep.subr.mxu0 %v257
    %850 = vmatpush1.msra.mxu0 %v256
    %851 = vmatprep.subr.mxu0 %v265
    %852 = vmatpush1.msra.mxu0 %v264
    %853 = vmatprep.subr.mxu0 %v273
    %854 = vmatpush1.msra.mxu0 %v272
    %855 = vmatprep.subr.mxu0 %v281
    %856 = vmatpush1.msra.mxu0 %v280
    %857 = vmatprep.mubr.f32.mxu0 %v476
    %858 = vmatmul.mubr.f32.gmra.mrb[0].mxu0 %v468
    %v859 = vpop.f32.mrb[0].mxu0
    %v860 = vadd.f32 0.0, %v859
    %v861 = vpop.f32.mrb[0].mxu0
    %v862 = vadd.f32 0.0, %v861
    %863 = vdwg.mxu0
    %864 = vmatprep.subr.mxu0 %v289
    %865 = vmatpush1.msra.mxu0 %v288
    %866 = vmatprep.subr.mxu0 %v297
    %867 = vmatpush1.msra.mxu0 %v296
    %868 = vmatprep.subr.mxu0 %v305
    %869 = vmatpush1.msra.mxu0 %v304
    %870 = vmatprep.subr.mxu0 %v313
    %871 = vmatpush1.msra.mxu0 %v312
    %872 = vmatprep.subr.mxu0 %v321
    %873 = vmatpush1.msra.mxu0 %v320
    %874 = vmatprep.subr.mxu0 %v329
    %875 = vmatpush1.msra.mxu0 %v328
    %876 = vmatprep.subr.mxu0 %v337
    %877 = vmatpush1.msra.mxu0 %v336
    %878 = vmatprep.subr.mxu0 %v345
    %879 = vmatpush1.msra.mxu0 %v344
    %880 = vmatprep.subr.mxu0 %v353
    %881 = vmatpush1.msra.mxu0 %v352
    %882 = vmatprep.subr.mxu0 %v361
    %883 = vmatpush1.msra.mxu0 %v360
    %884 = vmatprep.subr.mxu0 %v369
    %885 = vmatpush1.msra.mxu0 %v368
    %886 = vmatprep.subr.mxu0 %v377
    %887 = vmatpush1.msra.mxu0 %v376
    %888 = vmatprep.subr.mxu0 %v385
    %889 = vmatpush1.msra.mxu0 %v384
    %890 = vmatprep.subr.mxu0 %v393
    %891 = vmatpush1.msra.mxu0 %v392
    %892 = vmatprep.subr.mxu0 %v401
    %893 = vmatpush1.msra.mxu0 %v400
    %894 = vmatprep.subr.mxu0 %v409
    %895 = vmatpush1.msra.mxu0 %v408
    %896 = vmatprep.subr.mxu0 %v417
    %897 = vmatpush1.msra.mxu0 %v416
    %898 = vmatprep.subr.mxu0 %v425
    %899 = vmatpush1.msra.mxu0 %v424
    %900 = vmatprep.subr.mxu0 %v433
    %901 = vmatpush1.msra.mxu0 %v432
    %902 = vmatprep.subr.mxu0 %v441
    %903 = vmatpush1.msra.mxu0 %v440
    %904 = vmatprep.subr.mxu0 %v449
    %905 = vmatpush1.msra.mxu0 %v448
    %906 = vmatprep.subr.mxu0 %v501
    %907 = vmatpush1.msra.mxu0 %v498
    %908 = vmatprep.subr.mxu0 0.0
    %909 = vmatpush1.msra.mxu0 0.0
    %910 = vmatprep.subr.mxu0 0.0
    %911 = vmatpush1.msra.mxu0 0.0
    %912 = vmatprep.subr.mxu0 0.0
    %913 = vmatpush1.msra.mxu0 0.0
    %914 = vmatprep.subr.mxu0 0.0
    %915 = vmatpush1.msra.mxu0 0.0
    %916 = vmatprep.subr.mxu0 0.0
    %917 = vmatpush1.msra.mxu0 0.0
    %918 = vmatprep.subr.mxu0 0.0
    %919 = vmatpush1.msra.mxu0 0.0
    %920 = vmatprep.subr.mxu0 0.0
    %921 = vmatpush1.msra.mxu0 0.0
    %922 = vmatprep.subr.mxu0 0.0
    %923 = vmatpush1.msra.mxu0 0.0
    %924 = vmatprep.subr.mxu0 0.0
    %925 = vmatpush1.msra.mxu0 0.0
    %926 = vmatprep.subr.mxu0 0.0
    %927 = vmatpush1.msra.mxu0 0.0
    %928 = vmatprep.mubr.f32.mxu0 %v482
    %929 = vmatmul.mubr.f32.gmra.mrb[0].mxu0 %v475
    %v930 = vpop.f32.mrb[0].mxu0
    %v931 = vadd.f32 %v860, %v930
    %v932 = vpop.f32.mrb[0].mxu0
    %v933 = vadd.f32 %v862, %v932
    %934 = vdwg.mxu0
    %935 = vmatprep.subr.mxu0 %v35
    %936 = vmatpush1.msra.mxu0 %v34
    %937 = vmatprep.subr.mxu0 %v43
    %938 = vmatpush1.msra.mxu0 %v42
    %939 = vmatprep.subr.mxu0 %v51
    %940 = vmatpush1.msra.mxu0 %v50
    %941 = vmatprep.subr.mxu0 %v59
    %942 = vmatpush1.msra.mxu0 %v58
    %943 = vmatprep.subr.mxu0 %v67
    %944 = vmatpush1.msra.mxu0 %v66
    %945 = vmatprep.subr.mxu0 %v75
    %946 = vmatpush1.msra.mxu0 %v74
    %947 = vmatprep.subr.mxu0 %v83
    %948 = vmatpush1.msra.mxu0 %v82
    %949 = vmatprep.subr.mxu0 %v91
    %950 = vmatpush1.msra.mxu0 %v90
    %951 = vmatprep.subr.mxu0 %v99
    %952 = vmatpush1.msra.mxu0 %v98
    %953 = vmatprep.subr.mxu0 %v107
    %954 = vmatpush1.msra.mxu0 %v106
    %955 = vmatprep.subr.mxu0 %v115
    %956 = vmatpush1.msra.mxu0 %v114
    %957 = vmatprep.subr.mxu0 %v123
    %958 = vmatpush1.msra.mxu0 %v122
    %959 = vmatprep.subr.mxu0 %v131
    %960 = vmatpush1.msra.mxu0 %v130
    %961 = vmatprep.subr.mxu0 %v139
    %962 = vmatpush1.msra.mxu0 %v138
    %963 = vmatprep.subr.mxu0 %v147
    %964 = vmatpush1.msra.mxu0 %v146
    %965 = vmatprep.subr.mxu0 %v155
    %966 = vmatpush1.msra.mxu0 %v154
    %967 = vmatprep.subr.mxu0 %v163
    %968 = vmatpush1.msra.mxu0 %v162
    %969 = vmatprep.subr.mxu0 %v171
    %970 = vmatpush1.msra.mxu0 %v170
    %971 = vmatprep.subr.mxu0 %v179
    %972 = vmatpush1.msra.mxu0 %v178
    %973 = vmatprep.subr.mxu0 %v187
    %974 = vmatpush1.msra.mxu0 %v186
    %975 = vmatprep.subr.mxu0 %v195
    %976 = vmatpush1.msra.mxu0 %v194
    %977 = vmatprep.subr.mxu0 %v203
    %978 = vmatpush1.msra.mxu0 %v202
    %979 = vmatprep.subr.mxu0 %v211
    %980 = vmatpush1.msra.mxu0 %v210
    %981 = vmatprep.subr.mxu0 %v219
    %982 = vmatpush1.msra.mxu0 %v218
    %983 = vmatprep.subr.mxu0 %v227
    %984 = vmatpush1.msra.mxu0 %v226
    %985 = vmatprep.subr.mxu0 %v235
    %986 = vmatpush1.msra.mxu0 %v234
    %987 = vmatprep.subr.mxu0 %v243
    %988 = vmatpush1.msra.mxu0 %v242
    %989 = vmatprep.subr.mxu0 %v251
    %990 = vmatpush1.msra.mxu0 %v250
    %991 = vmatprep.subr.mxu0 %v259
    %992 = vmatpush1.msra.mxu0 %v258
    %993 = vmatprep.subr.mxu0 %v267
    %994 = vmatpush1.msra.mxu0 %v266
    %995 = vmatprep.subr.mxu0 %v275
    %996 = vmatpush1.msra.mxu0 %v274
    %997 = vmatprep.subr.mxu0 %v283
    %998 = vmatpush1.msra.mxu0 %v282
    %999 = vmatprep.mubr.f32.mxu0 %v476
    %1000 = vmatmul.mubr.f32.gmra.mrb[0].mxu0 %v468
    %v1001 = vpop.f32.mrb[0].mxu0
    %v1002 = vadd.f32 0.0, %v1001
    %v1003 = vpop.f32.mrb[0].mxu0
    %v1004 = vadd.f32 0.0, %v1003
    %1005 = vdwg.mxu0
    %1006 = vmatprep.subr.mxu0 %v291
    %1007 = vmatpush1.msra.mxu0 %v290
    %1008 = vmatprep.subr.mxu0 %v299
    %1009 = vmatpush1.msra.mxu0 %v298
    %1010 = vmatprep.subr.mxu0 %v307
    %1011 = vmatpush1.msra.mxu0 %v306
    %1012 = vmatprep.subr.mxu0 %v315
    %1013 = vmatpush1.msra.mxu0 %v314
    %1014 = vmatprep.subr.mxu0 %v323
    %1015 = vmatpush1.msra.mxu0 %v322
    %1016 = vmatprep.subr.mxu0 %v331
    %1017 = vmatpush1.msra.mxu0 %v330
    %1018 = vmatprep.subr.mxu0 %v339
    %1019 = vmatpush1.msra.mxu0 %v338
    %1020 = vmatprep.subr.mxu0 %v347
    %1021 = vmatpush1.msra.mxu0 %v346
    %1022 = vmatprep.subr.mxu0 %v355
    %1023 = vmatpush1.msra.mxu0 %v354
    %1024 = vmatprep.subr.mxu0 %v363
    %1025 = vmatpush1.msra.mxu0 %v362
    %1026 = vmatprep.subr.mxu0 %v371
    %1027 = vmatpush1.msra.mxu0 %v370
    %1028 = vmatprep.subr.mxu0 %v379
    %1029 = vmatpush1.msra.mxu0 %v378
    %1030 = vmatprep.subr.mxu0 %v387
    %1031 = vmatpush1.msra.mxu0 %v386
    %1032 = vmatprep.subr.mxu0 %v395
    %1033 = vmatpush1.msra.mxu0 %v394
    %1034 = vmatprep.subr.mxu0 %v403
    %1035 = vmatpush1.msra.mxu0 %v402
    %1036 = vmatprep.subr.mxu0 %v411
    %1037 = vmatpush1.msra.mxu0 %v410
    %1038 = vmatprep.subr.mxu0 %v419
    %1039 = vmatpush1.msra.mxu0 %v418
    %1040 = vmatprep.subr.mxu0 %v427
    %1041 = vmatpush1.msra.mxu0 %v426
    %1042 = vmatprep.subr.mxu0 %v435
    %1043 = vmatpush1.msra.mxu0 %v434
    %1044 = vmatprep.subr.mxu0 %v443
    %1045 = vmatpush1.msra.mxu0 %v442
    %1046 = vmatprep.subr.mxu0 %v451
    %1047 = vmatpush1.msra.mxu0 %v450
    %1048 = vmatprep.subr.mxu0 %v507
    %1049 = vmatpush1.msra.mxu0 %v504
    %1050 = vmatprep.subr.mxu0 0.0
    %1051 = vmatpush1.msra.mxu0 0.0
    %1052 = vmatprep.subr.mxu0 0.0
    %1053 = vmatpush1.msra.mxu0 0.0
    %1054 = vmatprep.subr.mxu0 0.0
    %1055 = vmatpush1.msra.mxu0 0.0
    %1056 = vmatprep.subr.mxu0 0.0
    %1057 = vmatpush1.msra.mxu0 0.0
    %1058 = vmatprep.subr.mxu0 0.0
    %1059 = vmatpush1.msra.mxu0 0.0
    %1060 = vmatprep.subr.mxu0 0.0
    %1061 = vmatpush1.msra.mxu0 0.0
    %1062 = vmatprep.subr.mxu0 0.0
    %1063 = vmatpush1.msra.mxu0 0.0
    %1064 = vmatprep.subr.mxu0 0.0
    %1065 = vmatpush1.msra.mxu0 0.0
    %1066 = vmatprep.subr.mxu0 0.0
    %1067 = vmatpush1.msra.mxu0 0.0
    %1068 = vmatprep.subr.mxu0 0.0
    %1069 = vmatpush1.msra.mxu0 0.0
    %1070 = vmatprep.mubr.f32.mxu0 %v482
    %1071 = vmatmul.mubr.f32.gmra.mrb[0].mxu0 %v475
    %v1072 = vpop.f32.mrb[0].mxu0
    %v1073 = vadd.f32 %v1002, %v1072
    %v1074 = vpop.f32.mrb[0].mxu0
    %v1075 = vadd.f32 %v1004, %v1074
    %1076 = vdwg.mxu0
    %v1077 = vmax.f32 %v647, %v649
    %v1078 = vmax.f32 %v1077, %v789
    %v1079 = vmax.f32 %v1078, %v791
    %v1080 = vmax.f32 %v1079, %v931
    %v1081 = vmax.f32 %v1080, %v933
    %v1082 = vmax.f32 %v1081, %v1073
    %v1083 = vmax.f32 %v1082, %v1075
    %v1084 = vld [vmem:[%s2] sm:$0x1]
    %v1086 = vlaneseq
    %v1087 = vshrl.u32 %v1086, 7
    %v1088 = vsub.s32 0, %v1087
    %v1089 = vrot.slane %v1084, %v1088
    %v1091 = vadd.f32 %v1083, %v1089
    %v1092 = vmax.f32 %v1091, 0.0
    %v1093 = vand.u32 2147483647, %v1091
    %v1094 = vsub.f32 0.0, %v1093
    %v1095 = vmul.f32 %v1094, 1.442695
    %v1096 = vpow.pop %v1095
    %v1097 = vadd.f32 %v1096, 1.0
    %v1098 = vlog2.pop %v1097
    %v1099 = vmul.f32 %v1098, 0.6931472
    %v1100 = vmul.f32 -0.5, %v1096
    %v1101 = vadd.f32 %v1100, 1.0
    %v1102 = vmul.f32 %v1101, %v1096
    %v1103 = vand.u32 2147483647, %v1096
    %vm1104 = vcmp.lt.f32.partialorder %v1103, 0.0004427343
    %v1105 = vsel %vm1104, %v1102, %v1099
    %v1106 = vadd.f32 %v1092, %v1105
    %v1107 = vld [vmem:[%s3] sm:$0xff]
    %v1108 = vld [vmem:[%s3 + $0x8] sm:$0xff]
    %v1109 = vld [vmem:[%s3 + $0x10] sm:$0xff]
    %v1110 = vld [vmem:[%s3 + $0x18] sm:$0xff]
    %v1111 = vld [vmem:[%s3 + $0x20] sm:$0xff]
    %v1112 = vld [vmem:[%s3 + $0x28] sm:$0xff]
    %v1113 = vld [vmem:[%s3 + $0x30] sm:$0xff]
    %v1114 = vld [vmem:[%s3 + $0x38] sm:$0xff]
    %v1115 = vld [vmem:[%s3 + $0x40] sm:$0xff]
    %v1116 = vld [vmem:[%s3 + $0x48] sm:$0xff]
    %v1117 = vld [vmem:[%s3 + $0x50] sm:$0xff]
    %v1118 = vld [vmem:[%s3 + $0x58] sm:$0xff]
    %v1119 = vld [vmem:[%s3 + $0x60] sm:$0xff]
    %v1120 = vld [vmem:[%s3 + $0x68] sm:$0xff]
    %v1121 = vld [vmem:[%s3 + $0x70] sm:$0xff]
    %v1122 = vld [vmem:[%s3 + $0x78] sm:$0xff]
    %v1123 = vld [vmem:[%s4] sm:$0x1]
    %v1125 = vlaneseq
    %v1126 = vshrl.u32 %v1125, 7
    %v1127 = vsub.s32 0, %v1126
    %v1128 = vrot.slane %v1123, %v1127
    %1130 = vmatprep.subr.mxu0 0.0
    %1131 = vmatpush1.msra.mxu0 %v1107
    %1132 = vmatprep.subr.mxu0 0.0
    %1133 = vmatpush1.msra.mxu0 %v1108
    %1134 = vmatprep.subr.mxu0 0.0
    %1135 = vmatpush1.msra.mxu0 %v1109
    %1136 = vmatprep.subr.mxu0 0.0
    %1137 = vmatpush1.msra.mxu0 %v1110
    %1138 = vmatprep.subr.mxu0 0.0
    %1139 = vmatpush1.msra.mxu0 %v1111
    %1140 = vmatprep.subr.mxu0 0.0
    %1141 = vmatpush1.msra.mxu0 %v1112
    %1142 = vmatprep.subr.mxu0 0.0
    %1143 = vmatpush1.msra.mxu0 %v1113
    %1144 = vmatprep.subr.mxu0 0.0
    %1145 = vmatpush1.msra.mxu0 %v1114
    %1146 = vmatprep.subr.mxu0 0.0
    %1147 = vmatpush1.msra.mxu0 %v1115
    %1148 = vmatprep.subr.mxu0 0.0
    %1149 = vmatpush1.msra.mxu0 %v1116
    %1150 = vmatprep.subr.mxu0 0.0
    %1151 = vmatpush1.msra.mxu0 %v1117
    %1152 = vmatprep.subr.mxu0 0.0
    %1153 = vmatpush1.msra.mxu0 %v1118
    %1154 = vmatprep.subr.mxu0 0.0
    %1155 = vmatpush1.msra.mxu0 %v1119
    %1156 = vmatprep.subr.mxu0 0.0
    %1157 = vmatpush1.msra.mxu0 %v1120
    %1158 = vmatprep.subr.mxu0 0.0
    %1159 = vmatpush1.msra.mxu0 %v1121
    %1160 = vmatprep.subr.mxu0 0.0
    %1161 = vmatpush1.msra.mxu0 %v1122
    %1162 = vmatprep.subr.mxu0 0.0
    %1163 = vmatpush1.msra.mxu0 0.0
    %1164 = vmatprep.subr.mxu0 0.0
    %1165 = vmatpush1.msra.mxu0 0.0
    %1166 = vmatprep.subr.mxu0 0.0
    %1167 = vmatpush1.msra.mxu0 0.0
    %1168 = vmatprep.subr.mxu0 0.0
    %1169 = vmatpush1.msra.mxu0 0.0
    %1170 = vmatprep.subr.mxu0 0.0
    %1171 = vmatpush1.msra.mxu0 0.0
    %1172 = vmatprep.subr.mxu0 0.0
    %1173 = vmatpush1.msra.mxu0 0.0
    %1174 = vmatprep.subr.mxu0 0.0
    %1175 = vmatpush1.msra.mxu0 0.0
    %1176 = vmatprep.subr.mxu0 0.0
    %1177 = vmatpush1.msra.mxu0 0.0
    %1178 = vmatprep.subr.mxu0 0.0
    %1179 = vmatpush1.msra.mxu0 0.0
    %1180 = vmatprep.subr.mxu0 0.0
    %1181 = vmatpush1.msra.mxu0 0.0
    %1182 = vmatprep.subr.mxu0 0.0
    %1183 = vmatpush1.msra.mxu0 0.0
    %1184 = vmatprep.subr.mxu0 0.0
    %1185 = vmatpush1.msra.mxu0 0.0
    %1186 = vmatprep.subr.mxu0 0.0
    %1187 = vmatpush1.msra.mxu0 0.0
    %1188 = vmatprep.subr.mxu0 0.0
    %1189 = vmatpush1.msra.mxu0 0.0
    %1190 = vmatprep.subr.mxu0 0.0
    %1191 = vmatpush1.msra.mxu0 0.0
    %1192 = vmatprep.subr.mxu0 0.0
    %1193 = vmatpush1.msra.mxu0 0.0
    %1194 = vmatprep.mubr.f32.mxu0 0.0
    %1195 = vmatmul.mubr.f32.gmra.mrb[0].mxu0 %v1106
    %v1196 = vpop.f32.mrb[0].mxu0
    %v1197 = vadd.f32 %v1128, %v1196
    %v1198 = vpop.f32.mrb[0].mxu0
    %1199 = vdwg.mxu0
    %v1200 = vmax.f32 %v1197, 0.0
    %v1201 = vand.u32 2147483647, %v1197
    %v1202 = vsub.f32 0.0, %v1201
    %v1203 = vmul.f32 %v1202, 1.442695
    %v1204 = vpow.pop %v1203
    %v1205 = vadd.f32 %v1204, 1.0
    %v1206 = vlog2.pop %v1205
    %v1207 = vmul.f32 %v1206, 0.6931472
    %v1208 = vmul.f32 -0.5, %v1204
    %v1209 = vadd.f32 %v1208, 1.0
    %v1210 = vmul.f32 %v1209, %v1204
    %v1211 = vand.u32 2147483647, %v1204
    %vm1212 = vcmp.lt.f32.partialorder %v1211, 0.0004427343
    %v1213 = vsel %vm1212, %v1210, %v1207
    %v1214 = vadd.f32 %v1200, %v1213
    %v1215 = vld [vmem:[%s5] sm:$0xff]
    %v1216 = vld [vmem:[%s5 + $0x8] sm:$0xff]
    %v1217 = vld [vmem:[%s5 + $0x10] sm:$0xff]
    %v1218 = vld [vmem:[%s5 + $0x18] sm:$0xff]
    %v1219 = vld [vmem:[%s6] sm:$0x1]
    %v1221 = vlaneseq
    %v1222 = vshrl.u32 %v1221, 7
    %v1223 = vsub.s32 0, %v1222
    %v1224 = vrot.slane %v1219, %v1223
    %vm1226 = vcmask 261120
    %v1228 = vsel %vm1226, %v1214, 0
    %1230 = vmatprep.subr.mxu0 0.0
    %1231 = vmatpush1.msra.mxu0 %v1215
    %1232 = vmatprep.subr.mxu0 0.0
    %1233 = vmatpush1.msra.mxu0 %v1216
    %1234 = vmatprep.subr.mxu0 0.0
    %1235 = vmatpush1.msra.mxu0 %v1217
    %1236 = vmatprep.subr.mxu0 0.0
    %1237 = vmatpush1.msra.mxu0 %v1218
    %1238 = vmatprep.subr.mxu0 0.0
    %1239 = vmatpush1.msra.mxu0 0.0
    %1240 = vmatprep.subr.mxu0 0.0
    %1241 = vmatpush1.msra.mxu0 0.0
    %1242 = vmatprep.subr.mxu0 0.0
    %1243 = vmatpush1.msra.mxu0 0.0
    %1244 = vmatprep.subr.mxu0 0.0
    %1245 = vmatpush1.msra.mxu0 0.0
    %1246 = vmatprep.subr.mxu0 0.0
    %1247 = vmatpush1.msra.mxu0 0.0
    %1248 = vmatprep.subr.mxu0 0.0
    %1249 = vmatpush1.msra.mxu0 0.0
    %1250 = vmatprep.subr.mxu0 0.0
    %1251 = vmatpush1.msra.mxu0 0.0
    %1252 = vmatprep.subr.mxu0 0.0
    %1253 = vmatpush1.msra.mxu0 0.0
    %1254 = vmatprep.subr.mxu0 0.0
    %1255 = vmatpush1.msra.mxu0 0.0
    %1256 = vmatprep.subr.mxu0 0.0
    %1257 = vmatpush1.msra.mxu0 0.0
    %1258 = vmatprep.subr.mxu0 0.0
    %1259 = vmatpush1.msra.mxu0 0.0
    %1260 = vmatprep.subr.mxu0 0.0
    %1261 = vmatpush1.msra.mxu0 0.0
    %1262 = vmatprep.subr.mxu0 0.0
    %1263 = vmatpush1.msra.mxu0 0.0
    %1264 = vmatprep.subr.mxu0 0.0
    %1265 = vmatpush1.msra.mxu0 0.0
    %1266 = vmatprep.subr.mxu0 0.0
    %1267 = vmatpush1.msra.mxu0 0.0
    %1268 = vmatprep.subr.mxu0 0.0
    %1269 = vmatpush1.msra.mxu0 0.0
    %1270 = vmatprep.subr.mxu0 0.0
    %1271 = vmatpush1.msra.mxu0 0.0
    %1272 = vmatprep.subr.mxu0 0.0
    %1273 = vmatpush1.msra.mxu0 0.0
    %1274 = vmatprep.subr.mxu0 0.0
    %1275 = vmatpush1.msra.mxu0 0.0
    %1276 = vmatprep.subr.mxu0 0.0
    %1277 = vmatpush1.msra.mxu0 0.0
    %1278 = vmatprep.subr.mxu0 0.0
    %1279 = vmatpush1.msra.mxu0 0.0
    %1280 = vmatprep.subr.mxu0 0.0
    %1281 = vmatpush1.msra.mxu0 0.0
    %1282 = vmatprep.subr.mxu0 0.0
    %1283 = vmatpush1.msra.mxu0 0.0
    %1284 = vmatprep.subr.mxu0 0.0
    %1285 = vmatpush1.msra.mxu0 0.0
    %1286 = vmatprep.subr.mxu0 0.0
    %1287 = vmatpush1.msra.mxu0 0.0
    %1288 = vmatprep.subr.mxu0 0.0
    %1289 = vmatpush1.msra.mxu0 0.0
    %1290 = vmatprep.subr.mxu0 0.0
    %1291 = vmatpush1.msra.mxu0 0.0
    %1292 = vmatprep.subr.mxu0 0.0
    %1293 = vmatpush1.msra.mxu0 0.0
    %1294 = vmatprep.mubr.f32.mxu0 0.0
    %1295 = vmatmul.mubr.f32.gmra.mrb[0].mxu0 %v1228
    %v1296 = vpop.f32.mrb[0].mxu0
    %v1297 = vadd.f32 %v1224, %v1296
    %v1298 = vpop.f32.mrb[0].mxu0
    %1299 = vdwg.mxu0
    %vm1300 = vcmask 74752
    %1301 = vst.msk [vmem:[#allocation2] sm:$0x3] %vm1300, %v1297
    // Predicated region
    $region30: #{nodropout1d_forward.1} parent=1 // pred_check
      _
    $region31: #{nodropout1d_forward.1} parent=1 // pred_check_branch
      %1303 = sbr.rel (0) target = $region33
    $region32: #{nodropout1d_forward.1} parent=1 // pred_region
      %s1305 = ssub.s32 32, 32
      %1306 = vsyncadd [#allocation3], %s1305
      %s1308 = sshll.u32 [#allocation2], 4
      %s1309 = int_to_ptr.vmem [resolvable:$true] %s1308
      %1311 = dma.vmem_to_hbm [thread:$0]  %s1309, 32, %s7, [#allocation3]
    $region33: #{nodropout1d_forward.1} parent=1 // pred_fallthru
      _
    // Predicated region
    $region34: #{nodropout1d_forward.1} parent=1 // pred_check
      _
    $region35: #{nodropout1d_forward.1} parent=1 // pred_check_branch
      %1313 = sbr.rel (0) target = $region37
    $region36: #{nodropout1d_forward.1} parent=1 // pred_region
      %1314 = dma.done [#allocation3], 32
    $region37: #{nodropout1d_forward.1} parent=1 // pred_fallthru
      _
    %1315 = vsyncpa [#allocation3], 1

</llo_original>
